<compile_context>
chip_gen: v6e
topology: v6e:2x2x1
jax: 0.10.0
libtpu: 0.0.40
codegen_flags: <defaults>
</compile_context>

<pallas_src>
import functools

import jax
import jax.numpy as jnp
from jax.experimental import pallas as pl
from jax.experimental.pallas import tpu as pltpu


def _round_up(x, m):
    return ((x + m - 1) // m) * m


def _num_tensorcores():
    """Best-effort TensorCore count (1 on v5e/v6e, 2 on v7x); safe fallback 1."""
    try:
        info = pltpu.get_tpu_info()
        for attr in ("num_cores", "core_count", "num_tensorcores",
                     "num_tensor_cores", "tensorcores_per_chip"):
            v = getattr(info, attr, None)
            if isinstance(v, int) and v > 0:
                return int(v)
    except Exception:
        pass
    return 1


_NUM_TENSORCORES = _num_tensorcores()


# ----------------------------- slab layouts ---------------------------------

def _weight_shapes(P, Dd, D):
    # (name, rows=fan_in, cols=fan_out) in packing order; w10 / wr0 are the
    # full fused concat weights, wdf is [fc_feature | fc_density].
    return (
        ("w00", P, D),
        ("w01", D, D), ("w02", D, D), ("w03", D, D),
        ("w10", D + P, D),
        ("w11", D, D), ("w12", D, D), ("w13", D, D),
        ("wdf", D, D + 1),
        ("wr0", D + Dd, D // 2),
        ("wr", D // 2, 3),
    )


def _bias_shapes(D):
    return (
        ("b00", D), ("b01", D), ("b02", D), ("b03", D),
        ("b10", D), ("b11", D), ("b12", D), ("b13", D),
        ("bdf", D + 1), ("brg", D // 2), ("br", 3),
    )


def _layouts(P, Dd, D):
    wshapes = _weight_shapes(P, Dd, D)
    bshapes = _bias_shapes(D)
    slab_w = _round_up(max(c for _, _, c in wshapes), 128)
    wlay, off = {}, 0
    for name, r, c in wshapes:
        wlay[name] = (off, r, c)
        off += _round_up(r, 16)          # 16-row aligned bf16 sub-blocks
    blay = {name: (j, c) for j, (name, c) in enumerate(bshapes)}
    brows = _round_up(len(bshapes), 8)
    return wlay, off, blay, brows, slab_w


# ------------------------------- kernel -------------------------------------

def nerf_kernel(pos_ref, dir_ref, w_ref, b_ref, out_ref, *, wlay, blay, D):
    f32 = jnp.float32
    cdt = w_ref.dtype                     # bf16 matmul operands

    def wl(name):                         # static sub-slice of the weight slab
        off, r, c = wlay[name]
        return w_ref[off:off + r, 0:c]

    def bl(name):                         # one f32 bias row, shape (1, c)
        row, c = blay[name]
        return b_ref[row:row + 1, 0:c]

    def lin_relu(x, wn, bn):
        y = jnp.dot(x.astype(cdt), wl(wn), preferred_element_type=f32)
        return jnp.maximum(y + bl(bn), 0.0)

    # ---- layers0: 4 x (Linear + ReLU) -------------------------------------
    h = lin_relu(pos_ref[...], "w00", "b00")
    h = lin_relu(h, "w01", "b01")
    h = lin_relu(h, "w02", "b02")
    h = lin_relu(h, "w03", "b03")

    # ---- layers1 skip: ONE fused dot on lane-concatenated [h | pos] --------
    # (pos re-read from VMEM here to keep vreg live ranges short at big tm).
    hp = jnp.concatenate([h.astype(cdt), pos_ref[...].astype(cdt)], axis=-1)
    h = jnp.maximum(
        jnp.dot(hp, wl("w10"), preferred_element_type=f32) + bl("b10"), 0.0)
    h = lin_relu(h, "w11", "b11")
    h = lin_relu(h, "w12", "b12")
    h = lin_relu(h, "w13", "b13")

    # ---- fused fc_feature | fc_density head: one (D, D+1) matmul -----------
    hf = jnp.dot(h.astype(cdt), wl("wdf"), preferred_element_type=f32) + bl("bdf")
    out_ref[:, 3:4] = hf[:, D:D + 1].astype(out_ref.dtype)   # density, stored now
    feat = hf[:, 0:D]

    # ---- rgb branch: ONE fused dot on lane-concatenated [feat | dir] -------
    fd = jnp.concatenate([feat.astype(cdt), dir_ref[...].astype(cdt)], axis=-1)
    h2 = jnp.maximum(
        jnp.dot(fd, wl("wr0"), preferred_element_type=f32) + bl("brg"), 0.0)
    logits = jnp.dot(h2.astype(cdt), wl("wr"), preferred_element_type=f32) + bl("br")
    # sigmoid via exp + approx reciprocal (EUP slot, nearly free)
    out_ref[:, 0:3] = pl.reciprocal(1.0 + jnp.exp(-logits),
                                    approx=True).astype(out_ref.dtype)


# --------------------------- params / packing -------------------------------

def init_params(key, pos_in, dir_in, D):
    """torch nn.Linear-style init: U(-1/sqrt(fan_in), 1/sqrt(fan_in))."""
    def linear(k, fan_in, fan_out):
        kw, kb = jax.random.split(k)
        bound = 1.0 / jnp.sqrt(jnp.float32(fan_in))
        w = jax.random.uniform(kw, (fan_in, fan_out), jnp.float32, -bound, bound)
        b = jax.random.uniform(kb, (fan_out,), jnp.float32, -bound, bound)
        return w, b

    keys = jax.random.split(key, 12)
    p = {}
    p["w00"], p["b00"] = linear(keys[0], pos_in, D)
    p["w01"], p["b01"] = linear(keys[1], D, D)
    p["w02"], p["b02"] = linear(keys[2], D, D)
    p["w03"], p["b03"] = linear(keys[3], D, D)
    p["w10"], p["b10"] = linear(keys[4], D + pos_in, D)     # skip layer
    p["w11"], p["b11"] = linear(keys[5], D, D)
    p["w12"], p["b12"] = linear(keys[6], D, D)
    p["w13"], p["b13"] = linear(keys[7], D, D)
    p["wd"], _ = linear(keys[8], D, 1)                      # fc_density
    p["bd"] = jnp.full((1,), 0.1, jnp.float32)              # bias fixed to 0.1
    p["wf"], p["bf"] = linear(keys[9], D, D)                # fc_feature
    p["wr0"], p["brg"] = linear(keys[10], D + dir_in, D // 2)  # rgb_layers
    p["wr"], _ = linear(keys[11], D // 2, 3)                # fc_rgb
    p["br"] = jnp.full((3,), 0.02, jnp.float32)             # bias fixed to 0.02
    return p


def pack_params(params, pos_in, dir_in, D, compute_dtype=jnp.bfloat16):
    """One-time packing of all weights into a bf16 slab and biases into an f32
    slab (hoisted out of the per-call forward)."""
    fused_w = {
        "w00": params["w00"],
        "w01": params["w01"], "w02": params["w02"], "w03": params["w03"],
        "w10": params["w10"],
        "w11": params["w11"], "w12": params["w12"], "w13": params["w13"],
        "wdf": jnp.concatenate([params["wf"], params["wd"]], axis=1),
        "wr0": params["wr0"],
        "wr": params["wr"],
    }
    fused_b = {
        "b00": params["b00"], "b01": params["b01"],
        "b02": params["b02"], "b03": params["b03"],
        "b10": params["b10"], "b11": params["b11"],
        "b12": params["b12"], "b13": params["b13"],
        "bdf": jnp.concatenate([params["bf"], params["bd"]], axis=0),
        "brg": params["brg"],
        "br": params["br"],
    }
    wlay, wrows, blay, brows, slab_w = _layouts(pos_in, dir_in, D)
    wslab = jnp.zeros((wrows, slab_w), compute_dtype)
    for name, (off, r, c) in wlay.items():
        wslab = wslab.at[off:off + r, :c].set(fused_w[name].astype(compute_dtype))
    bslab = jnp.zeros((brows, slab_w), jnp.float32)
    for name, (row, c) in blay.items():
        bslab = bslab.at[row, :c].set(fused_b[name].astype(jnp.float32).reshape(-1))
    return wslab, bslab


# ------------------------------- forward ------------------------------------

@functools.partial(jax.jit, static_argnames=("D", "tm"))
def vanilla_nerf_forward(pos_enc, dir_enc, wslab, bslab, *, D, tm=1024):
    B, N, P = pos_enc.shape
    _, _, Dd = dir_enc.shape
    R = B * N

    # Row tile: big by default; only clamp down so multi-TensorCore parts get
    # >= 2 grid steps per core (single-core v5e/v6e keep one big tile).
    n_cores = _NUM_TENSORCORES
    min_steps = 2 * n_cores if n_cores > 1 else 1
    tm = _round_up(max(int(tm), 16), 16)
    tm_eff = max(16, min(tm, _round_up(pl.cdiv(R, min_steps), 16)))
    Rp = _round_up(R, tm_eff)

    # Inputs stay in their original dtype (f32) — cast to bf16 inside the
    # kernel at the dot operands; pad rows only when B*N is ragged.
    pos2 = pos_enc.reshape(R, P)
    dir2 = dir_enc.reshape(R, Dd)
    if Rp != R:
        pos2 = jnp.pad(pos2, ((0, Rp - R), (0, 0)))
        dir2 = jnp.pad(dir2, ((0, Rp - R), (0, 0)))

    wlay, wrows, blay, brows, slab_w = _layouts(P, Dd, D)
    if wslab.shape != (wrows, slab_w) or bslab.shape != (brows, slab_w):
        raise ValueError("packed slabs do not match the layout for these dims")

    kernel = functools.partial(nerf_kernel, wlay=wlay, blay=blay, D=D)

    out = pl.pallas_call(
        kernel,
        out_shape=jax.ShapeDtypeStruct((Rp, 4), jnp.float32),
        grid_spec=pl.GridSpec(
            grid=(Rp // tm_eff,),
            in_specs=[
                pl.BlockSpec((tm_eff, P), lambda i: (i, 0)),
                pl.BlockSpec((tm_eff, Dd), lambda i: (i, 0)),
                # Constant block index -> fetched once and kept resident.
                pl.BlockSpec((wrows, slab_w), lambda i: (0, 0)),
                pl.BlockSpec((brows, slab_w), lambda i: (0, 0)),
            ],
            out_specs=pl.BlockSpec((tm_eff, 4), lambda i: (i, 0)),
        ),
        compiler_params=pltpu.CompilerParams(
            dimension_semantics=("parallel",)),
    )(pos2, dir2, wslab, bslab)

    rgb = out[:R, 0:3].reshape(B, N, 3)
    density = out[:R, 3:4].reshape(B, N, 1)
    return rgb, density


# ------------------------------ reference -----------------------------------

def reference_forward(pos_enc, dir_enc, p):
    """Pure-JAX reference mirroring the torch forward (small=False)."""
    def relu(x):
        return jnp.maximum(x, 0.0)

    x = pos_enc
    for k in ("00", "01", "02", "03"):
        x = relu(x @ p["w" + k] + p["b" + k])
    x = jnp.concatenate([x, pos_enc], axis=2)
    for k in ("10", "11", "12", "13"):
        x = relu(x @ p["w" + k] + p["b" + k])
    density = x @ p["wd"] + p["bd"]
    feat = x @ p["wf"] + p["bf"]
    x = jnp.concatenate([feat, dir_enc], axis=2)
    x = relu(x @ p["wr0"] + p["brg"])
    rgb = jax.nn.sigmoid(x @ p["wr"] + p["br"])
    return rgb, density


if __name__ == "__main__":
    # Small shapes consistent with the module's forward:
    #   pos_enc (B, N_sample, pos_in_dims), dir_enc (B, N_sample, dir_in_dims)
    B, N = 2, 64
    pos_in_dims = 63   # level 10 positional encoding
    dir_in_dims = 27   # level 4 directional encoding
    D = 32             # hidden width

    key = jax.random.PRNGKey(0)
    k_pos, k_dir, k_par = jax.random.split(key, 3)
    pos_enc = jax.random.normal(k_pos, (B, N, pos_in_dims), jnp.float32)
    dir_enc = jax.random.normal(k_dir, (B, N, dir_in_dims), jnp.float32)

    params = init_params(k_par, pos_in_dims, dir_in_dims, D)
    wslab, bslab = pack_params(params, pos_in_dims, dir_in_dims, D)

    rgb, density = vanilla_nerf_forward(pos_enc, dir_enc, wslab, bslab, D=D)
    jax.block_until_ready((rgb, density))

    rgb_ref, den_ref = reference_forward(pos_enc, dir_enc, params)
    assert rgb.shape == (B, N, 3) and density.shape == (B, N, 1)
    # bf16 matmul operands + approx-reciprocal sigmoid -> loosened tolerance.
    assert jnp.allclose(rgb, rgb_ref, atol=2e-2, rtol=2e-2)
    assert jnp.allclose(density, den_ref, atol=2e-2, rtol=2e-2)

    print("KERNEL_OK")
</pallas_src>

<mosaic_0001>
module attributes {stable_mosaic.version = 11 : i64} {
  func.func @nerf_kernel(%arg0: i32, %arg1: memref<128x63xf32, #tpu.memory_space<vmem>>, %arg2: memref<128x27xf32, #tpu.memory_space<vmem>>, %arg3: memref<464x128xbf16, #tpu.memory_space<vmem>>, %arg4: memref<16x128xf32, #tpu.memory_space<vmem>>, %arg5: memref<128x4xf32, #tpu.memory_space<vmem>>) attributes {dimension_semantics = [#tpu.dimension_semantics<parallel>], iteration_bounds = array<i64: 1>, scalar_prefetch = 0 : i64, scratch_operands = 0 : i64, tpu.core_type = #tpu.core_type<tc>, window_params = [{transform_indices = @transform_0, window_bounds = array<i64: 128, 63>}, {transform_indices = @transform_1, window_bounds = array<i64: 128, 27>}, {pipeline_mode = #tpu.pipeline_mode<synchronous>, transform_indices = @transform_2, window_bounds = array<i64: 464, 128>}, {pipeline_mode = #tpu.pipeline_mode<synchronous>, transform_indices = @transform_3, window_bounds = array<i64: 16, 128>}, {transform_indices = @transform_4, window_bounds = array<i64: 128, 4>}]} {
    %c0 = arith.constant 0 : index
    %c0_0 = arith.constant 0 : index
    %0 = vector.load %arg1[%c0, %c0_0] : memref<128x63xf32, #tpu.memory_space<vmem>>, vector<128x63xf32>
    %1 = arith.truncf %0 : vector<128x63xf32> to vector<128x63xbf16>
    %c0_1 = arith.constant 0 : index
    %c0_2 = arith.constant 0 : index
    %2 = vector.load %arg3[%c0_1, %c0_2] : memref<464x128xbf16, #tpu.memory_space<vmem>>, vector<63x32xbf16>
    %cst = arith.constant dense<0.000000e+00> : vector<128x32xf32>
    %3 = tpu.matmul %1, %2, %cst {dimension_numbers = #tpu.dot_dimension_numbers<[1], [0], [0], [1], [0, 0, 1, 1], [], []>} : vector<128x63xbf16>, vector<63x32xbf16>, vector<128x32xf32> -> vector<128x32xf32>
    %c0_3 = arith.constant 0 : index
    %c0_4 = arith.constant 0 : index
    %4 = vector.load %arg4[%c0_3, %c0_4] : memref<16x128xf32, #tpu.memory_space<vmem>>, vector<1x32xf32>
    %5 = vector.broadcast %4 : vector<1x32xf32> to vector<128x32xf32>
    %6 = arith.addf %3, %5 : vector<128x32xf32>
    %cst_5 = arith.constant 0.000000e+00 : f32
    %7 = vector.broadcast %cst_5 : f32 to vector<128x32xf32>
    %8 = arith.maximumf %6, %7 : vector<128x32xf32>
    %9 = arith.truncf %8 : vector<128x32xf32> to vector<128x32xbf16>
    %c64 = arith.constant 64 : index
    %c0_6 = arith.constant 0 : index
    %10 = vector.load %arg3[%c64, %c0_6] : memref<464x128xbf16, #tpu.memory_space<vmem>>, vector<32x32xbf16>
    %cst_7 = arith.constant dense<0.000000e+00> : vector<128x32xf32>
    %11 = tpu.matmul %9, %10, %cst_7 {dimension_numbers = #tpu.dot_dimension_numbers<[1], [0], [0], [1], [0, 0, 1, 1], [], []>} : vector<128x32xbf16>, vector<32x32xbf16>, vector<128x32xf32> -> vector<128x32xf32>
    %c1 = arith.constant 1 : index
    %c0_8 = arith.constant 0 : index
    %12 = vector.load %arg4[%c1, %c0_8] : memref<16x128xf32, #tpu.memory_space<vmem>>, vector<1x32xf32>
    %13 = vector.broadcast %12 : vector<1x32xf32> to vector<128x32xf32>
    %14 = arith.addf %11, %13 : vector<128x32xf32>
    %cst_9 = arith.constant 0.000000e+00 : f32
    %15 = vector.broadcast %cst_9 : f32 to vector<128x32xf32>
    %16 = arith.maximumf %14, %15 : vector<128x32xf32>
    %17 = arith.truncf %16 : vector<128x32xf32> to vector<128x32xbf16>
    %c96 = arith.constant 96 : index
    %c0_10 = arith.constant 0 : index
    %18 = vector.load %arg3[%c96, %c0_10] : memref<464x128xbf16, #tpu.memory_space<vmem>>, vector<32x32xbf16>
    %cst_11 = arith.constant dense<0.000000e+00> : vector<128x32xf32>
    %19 = tpu.matmul %17, %18, %cst_11 {dimension_numbers = #tpu.dot_dimension_numbers<[1], [0], [0], [1], [0, 0, 1, 1], [], []>} : vector<128x32xbf16>, vector<32x32xbf16>, vector<128x32xf32> -> vector<128x32xf32>
    %c2 = arith.constant 2 : index
    %c0_12 = arith.constant 0 : index
    %20 = vector.load %arg4[%c2, %c0_12] : memref<16x128xf32, #tpu.memory_space<vmem>>, vector<1x32xf32>
    %21 = vector.broadcast %20 : vector<1x32xf32> to vector<128x32xf32>
    %22 = arith.addf %19, %21 : vector<128x32xf32>
    %cst_13 = arith.constant 0.000000e+00 : f32
    %23 = vector.broadcast %cst_13 : f32 to vector<128x32xf32>
    %24 = arith.maximumf %22, %23 : vector<128x32xf32>
    %25 = arith.truncf %24 : vector<128x32xf32> to vector<128x32xbf16>
    %c128 = arith.constant 128 : index
    %c0_14 = arith.constant 0 : index
    %26 = vector.load %arg3[%c128, %c0_14] : memref<464x128xbf16, #tpu.memory_space<vmem>>, vector<32x32xbf16>
    %cst_15 = arith.constant dense<0.000000e+00> : vector<128x32xf32>
    %27 = tpu.matmul %25, %26, %cst_15 {dimension_numbers = #tpu.dot_dimension_numbers<[1], [0], [0], [1], [0, 0, 1, 1], [], []>} : vector<128x32xbf16>, vector<32x32xbf16>, vector<128x32xf32> -> vector<128x32xf32>
    %c3 = arith.constant 3 : index
    %c0_16 = arith.constant 0 : index
    %28 = vector.load %arg4[%c3, %c0_16] : memref<16x128xf32, #tpu.memory_space<vmem>>, vector<1x32xf32>
    %29 = vector.broadcast %28 : vector<1x32xf32> to vector<128x32xf32>
    %30 = arith.addf %27, %29 : vector<128x32xf32>
    %cst_17 = arith.constant 0.000000e+00 : f32
    %31 = vector.broadcast %cst_17 : f32 to vector<128x32xf32>
    %32 = arith.maximumf %30, %31 : vector<128x32xf32>
    %33 = arith.truncf %32 : vector<128x32xf32> to vector<128x32xbf16>
    %c0_18 = arith.constant 0 : index
    %c0_19 = arith.constant 0 : index
    %34 = vector.load %arg1[%c0_18, %c0_19] : memref<128x63xf32, #tpu.memory_space<vmem>>, vector<128x63xf32>
    %35 = arith.truncf %34 : vector<128x63xf32> to vector<128x63xbf16>
    %36 = tpu.concatenate %33, %35 in 1 : vector<128x32xbf16>, vector<128x63xbf16> -> vector<128x95xbf16>
    %c160 = arith.constant 160 : index
    %c0_20 = arith.constant 0 : index
    %37 = vector.load %arg3[%c160, %c0_20] : memref<464x128xbf16, #tpu.memory_space<vmem>>, vector<95x32xbf16>
    %cst_21 = arith.constant dense<0.000000e+00> : vector<128x32xf32>
    %38 = tpu.matmul %36, %37, %cst_21 {dimension_numbers = #tpu.dot_dimension_numbers<[1], [0], [0], [1], [0, 0, 1, 1], [], []>} : vector<128x95xbf16>, vector<95x32xbf16>, vector<128x32xf32> -> vector<128x32xf32>
    %c4 = arith.constant 4 : index
    %c0_22 = arith.constant 0 : index
    %39 = vector.load %arg4[%c4, %c0_22] : memref<16x128xf32, #tpu.memory_space<vmem>>, vector<1x32xf32>
    %40 = vector.broadcast %39 : vector<1x32xf32> to vector<128x32xf32>
    %41 = arith.addf %38, %40 : vector<128x32xf32>
    %cst_23 = arith.constant 0.000000e+00 : f32
    %42 = vector.broadcast %cst_23 : f32 to vector<128x32xf32>
    %43 = arith.maximumf %41, %42 : vector<128x32xf32>
    %44 = arith.truncf %43 : vector<128x32xf32> to vector<128x32xbf16>
    %c256 = arith.constant 256 : index
    %c0_24 = arith.constant 0 : index
    %45 = vector.load %arg3[%c256, %c0_24] : memref<464x128xbf16, #tpu.memory_space<vmem>>, vector<32x32xbf16>
    %cst_25 = arith.constant dense<0.000000e+00> : vector<128x32xf32>
    %46 = tpu.matmul %44, %45, %cst_25 {dimension_numbers = #tpu.dot_dimension_numbers<[1], [0], [0], [1], [0, 0, 1, 1], [], []>} : vector<128x32xbf16>, vector<32x32xbf16>, vector<128x32xf32> -> vector<128x32xf32>
    %c5 = arith.constant 5 : index
    %c0_26 = arith.constant 0 : index
    %47 = vector.load %arg4[%c5, %c0_26] : memref<16x128xf32, #tpu.memory_space<vmem>>, vector<1x32xf32>
    %48 = vector.broadcast %47 : vector<1x32xf32> to vector<128x32xf32>
    %49 = arith.addf %46, %48 : vector<128x32xf32>
    %cst_27 = arith.constant 0.000000e+00 : f32
    %50 = vector.broadcast %cst_27 : f32 to vector<128x32xf32>
    %51 = arith.maximumf %49, %50 : vector<128x32xf32>
    %52 = arith.truncf %51 : vector<128x32xf32> to vector<128x32xbf16>
    %c288 = arith.constant 288 : index
    %c0_28 = arith.constant 0 : index
    %53 = vector.load %arg3[%c288, %c0_28] : memref<464x128xbf16, #tpu.memory_space<vmem>>, vector<32x32xbf16>
    %cst_29 = arith.constant dense<0.000000e+00> : vector<128x32xf32>
    %54 = tpu.matmul %52, %53, %cst_29 {dimension_numbers = #tpu.dot_dimension_numbers<[1], [0], [0], [1], [0, 0, 1, 1], [], []>} : vector<128x32xbf16>, vector<32x32xbf16>, vector<128x32xf32> -> vector<128x32xf32>
    %c6 = arith.constant 6 : index
    %c0_30 = arith.constant 0 : index
    %55 = vector.load %arg4[%c6, %c0_30] : memref<16x128xf32, #tpu.memory_space<vmem>>, vector<1x32xf32>
    %56 = vector.broadcast %55 : vector<1x32xf32> to vector<128x32xf32>
    %57 = arith.addf %54, %56 : vector<128x32xf32>
    %cst_31 = arith.constant 0.000000e+00 : f32
    %58 = vector.broadcast %cst_31 : f32 to vector<128x32xf32>
    %59 = arith.maximumf %57, %58 : vector<128x32xf32>
    %60 = arith.truncf %59 : vector<128x32xf32> to vector<128x32xbf16>
    %c320 = arith.constant 320 : index
    %c0_32 = arith.constant 0 : index
    %61 = vector.load %arg3[%c320, %c0_32] : memref<464x128xbf16, #tpu.memory_space<vmem>>, vector<32x32xbf16>
    %cst_33 = arith.constant dense<0.000000e+00> : vector<128x32xf32>
    %62 = tpu.matmul %60, %61, %cst_33 {dimension_numbers = #tpu.dot_dimension_numbers<[1], [0], [0], [1], [0, 0, 1, 1], [], []>} : vector<128x32xbf16>, vector<32x32xbf16>, vector<128x32xf32> -> vector<128x32xf32>
    %c7 = arith.constant 7 : index
    %c0_34 = arith.constant 0 : index
    %63 = vector.load %arg4[%c7, %c0_34] : memref<16x128xf32, #tpu.memory_space<vmem>>, vector<1x32xf32>
    %64 = vector.broadcast %63 : vector<1x32xf32> to vector<128x32xf32>
    %65 = arith.addf %62, %64 : vector<128x32xf32>
    %cst_35 = arith.constant 0.000000e+00 : f32
    %66 = vector.broadcast %cst_35 : f32 to vector<128x32xf32>
    %67 = arith.maximumf %65, %66 : vector<128x32xf32>
    %68 = arith.truncf %67 : vector<128x32xf32> to vector<128x32xbf16>
    %c352 = arith.constant 352 : index
    %c0_36 = arith.constant 0 : index
    %69 = vector.load %arg3[%c352, %c0_36] : memref<464x128xbf16, #tpu.memory_space<vmem>>, vector<32x33xbf16>
    %cst_37 = arith.constant dense<0.000000e+00> : vector<128x33xf32>
    %70 = tpu.matmul %68, %69, %cst_37 {dimension_numbers = #tpu.dot_dimension_numbers<[1], [0], [0], [1], [0, 0, 1, 1], [], []>} : vector<128x32xbf16>, vector<32x33xbf16>, vector<128x33xf32> -> vector<128x33xf32>
    %c8 = arith.constant 8 : index
    %c0_38 = arith.constant 0 : index
    %71 = vector.load %arg4[%c8, %c0_38] : memref<16x128xf32, #tpu.memory_space<vmem>>, vector<1x33xf32>
    %72 = vector.broadcast %71 : vector<1x33xf32> to vector<128x33xf32>
    %73 = arith.addf %70, %72 : vector<128x33xf32>
    %74 = vector.extract_strided_slice %73 {offsets = [0, 32], sizes = [128, 1], strides = [1, 1]} : vector<128x33xf32> to vector<128x1xf32>
    %c0_39 = arith.constant 0 : index
    %c3_40 = arith.constant 3 : index
    %75 = vector.load %arg5[%c0_39, %c3_40] : memref<128x4xf32, #tpu.memory_space<vmem>>, vector<128x1xf32>
    tpu.vector_store %arg5[%c0_39, %c3_40], %74 {strides = array<i32>} : memref<128x4xf32, #tpu.memory_space<vmem>>, vector<128x1xf32>,
    %76 = vector.extract_strided_slice %73 {offsets = [0, 0], sizes = [128, 32], strides = [1, 1]} : vector<128x33xf32> to vector<128x32xf32>
    %77 = arith.truncf %76 : vector<128x32xf32> to vector<128x32xbf16>
    %c0_41 = arith.constant 0 : index
    %c0_42 = arith.constant 0 : index
    %78 = vector.load %arg2[%c0_41, %c0_42] : memref<128x27xf32, #tpu.memory_space<vmem>>, vector<128x27xf32>
    %79 = arith.truncf %78 : vector<128x27xf32> to vector<128x27xbf16>
    %80 = tpu.concatenate %77, %79 in 1 : vector<128x32xbf16>, vector<128x27xbf16> -> vector<128x59xbf16>
    %c384 = arith.constant 384 : index
    %c0_43 = arith.constant 0 : index
    %81 = vector.load %arg3[%c384, %c0_43] : memref<464x128xbf16, #tpu.memory_space<vmem>>, vector<59x16xbf16>
    %cst_44 = arith.constant dense<0.000000e+00> : vector<128x16xf32>
    %82 = tpu.matmul %80, %81, %cst_44 {dimension_numbers = #tpu.dot_dimension_numbers<[1], [0], [0], [1], [0, 0, 1, 1], [], []>} : vector<128x59xbf16>, vector<59x16xbf16>, vector<128x16xf32> -> vector<128x16xf32>
    %c9 = arith.constant 9 : index
    %c0_45 = arith.constant 0 : index
    %83 = vector.load %arg4[%c9, %c0_45] : memref<16x128xf32, #tpu.memory_space<vmem>>, vector<1x16xf32>
    %84 = vector.broadcast %83 : vector<1x16xf32> to vector<128x16xf32>
    %85 = arith.addf %82, %84 : vector<128x16xf32>
    %cst_46 = arith.constant 0.000000e+00 : f32
    %86 = vector.broadcast %cst_46 : f32 to vector<128x16xf32>
    %87 = arith.maximumf %85, %86 : vector<128x16xf32>
    %88 = arith.truncf %87 : vector<128x16xf32> to vector<128x16xbf16>
    %c448 = arith.constant 448 : index
    %c0_47 = arith.constant 0 : index
    %89 = vector.load %arg3[%c448, %c0_47] : memref<464x128xbf16, #tpu.memory_space<vmem>>, vector<16x3xbf16>
    %cst_48 = arith.constant dense<0.000000e+00> : vector<128x3xf32>
    %90 = tpu.matmul %88, %89, %cst_48 {dimension_numbers = #tpu.dot_dimension_numbers<[1], [0], [0], [1], [0, 0, 1, 1], [], []>} : vector<128x16xbf16>, vector<16x3xbf16>, vector<128x3xf32> -> vector<128x3xf32>
    %c10 = arith.constant 10 : index
    %c0_49 = arith.constant 0 : index
    %91 = vector.load %arg4[%c10, %c0_49] : memref<16x128xf32, #tpu.memory_space<vmem>>, vector<1x3xf32>
    %92 = vector.broadcast %91 : vector<1x3xf32> to vector<128x3xf32>
    %93 = arith.addf %90, %92 : vector<128x3xf32>
    %cst_50 = arith.constant 0.000000e+00 : f32
    %94 = vector.broadcast %cst_50 : f32 to vector<128x3xf32>
    %95 = arith.subf %94, %93 : vector<128x3xf32>
    %96 = math.exp %95 : vector<128x3xf32>
    %cst_51 = arith.constant 1.000000e+00 : f32
    %97 = vector.broadcast %cst_51 : f32 to vector<128x3xf32>
    %98 = arith.addf %97, %96 : vector<128x3xf32>
    %99 = tpu.reciprocal %98 {approx = true} : vector<128x3xf32> -> vector<128x3xf32>
    %c0_52 = arith.constant 0 : index
    %c0_53 = arith.constant 0 : index
    %100 = vector.load %arg5[%c0_52, %c0_53] : memref<128x4xf32, #tpu.memory_space<vmem>>, vector<128x3xf32>
    tpu.vector_store %arg5[%c0_52, %c0_53], %99 {strides = array<i32>} : memref<128x4xf32, #tpu.memory_space<vmem>>, vector<128x3xf32>,
    return
  }
  func.func @transform_0(%arg0: i32) -> (i32, i32) {
    %c0_i32 = arith.constant 0 : i32
    %c0_i32_0 = arith.constant 0 : i32
    return %arg0, %c0_i32 : i32, i32
  }
  func.func @transform_1(%arg0: i32) -> (i32, i32) {
    %c0_i32 = arith.constant 0 : i32
    %c0_i32_0 = arith.constant 0 : i32
    return %arg0, %c0_i32 : i32, i32
  }
  func.func @transform_2(%arg0: i32) -> (i32, i32) {
    %c0_i32 = arith.constant 0 : i32
    %c0_i32_0 = arith.constant 0 : i32
    %c0_i32_1 = arith.constant 0 : i32
    return %c0_i32, %c0_i32_0 : i32, i32
  }
  func.func @transform_3(%arg0: i32) -> (i32, i32) {
    %c0_i32 = arith.constant 0 : i32
    %c0_i32_0 = arith.constant 0 : i32
    %c0_i32_1 = arith.constant 0 : i32
    return %c0_i32, %c0_i32_0 : i32, i32
  }
  func.func @transform_4(%arg0: i32) -> (i32, i32) {
    %c0_i32 = arith.constant 0 : i32
    %c0_i32_0 = arith.constant 0 : i32
    return %arg0, %c0_i32 : i32, i32
  }
}

</mosaic_0001>

<llo_original>
// kernel: vanilla_nerf_forward.1
$region0: #{vanilla_nerf_forward.1}
  #allocation0 [shape = 'u32[]', space=smem, size = 0x4, offset = 0x4, fixed_abs, tag = 'smem constant byte address 0x4 - core index']
  #allocation1 [shape = 'u32[144,128]{1,0:T(1,128)}', space=vmem, size = 0x12000, scoped, tag = 'internal scratch']
  %s0 = inlined_call_operand.vmem [shape: f32[128,63], index: 0, kind: input, shape index: {}]
  %s1 = inlined_call_operand.vmem [shape: f32[128,27], index: 1, kind: input, shape index: {}]
  %s2 = inlined_call_operand.vmem [shape: bf16[464,128], index: 2, kind: input, shape index: {}]
  %s3 = inlined_call_operand.vmem [shape: f32[16,128], index: 3, kind: input, shape index: {}]
  %s4 = inlined_call_operand.vmem [shape: f32[128,4], index: 4, kind: output, shape index: {}]
  %s5 = sld [smem:[#allocation0]]
  $region26: #{vanilla_nerf_forward.1} parent=0
    _
  %s7 = ssub.s32 1, %s5
  %s8 = scalar_select 0, %s7, %s5
  // Predicated region
  $region2: #{vanilla_nerf_forward.1} parent=0 // pred_check
    _
  $region3: #{vanilla_nerf_forward.1} parent=0 // pred_check_branch
    %10 = sbr.rel (0) target = $region5
  $region4: #{vanilla_nerf_forward.1} parent=0 // pred_region
    _
  $region5: #{vanilla_nerf_forward.1} parent=0 // pred_fallthru
    _
  // Predicated region
  $region6: #{vanilla_nerf_forward.1} parent=0 // pred_check
    _
  $region7: #{vanilla_nerf_forward.1} parent=0 // pred_check_branch
    %12 = sbr.rel (0) target = $region9
  $region8: #{vanilla_nerf_forward.1} parent=0 // pred_region
    _
  $region9: #{vanilla_nerf_forward.1} parent=0 // pred_fallthru
    _
  // Predicated region
  $region10: #{vanilla_nerf_forward.1} parent=0 // pred_check
    _
  $region11: #{vanilla_nerf_forward.1} parent=0 // pred_check_branch
    %14 = sbr.rel (0) target = $region13
  $region12: #{vanilla_nerf_forward.1} parent=0 // pred_region
    _
  $region13: #{vanilla_nerf_forward.1} parent=0 // pred_fallthru
    _
  // Predicated region
  $region14: #{vanilla_nerf_forward.1} parent=0 // pred_check
    _
  $region15: #{vanilla_nerf_forward.1} parent=0 // pred_check_branch
    %16 = sbr.rel (0) target = $region17
  $region16: #{vanilla_nerf_forward.1} parent=0 // pred_region
    _
  $region17: #{vanilla_nerf_forward.1} parent=0 // pred_fallthru
    _
  %v18 = vld [vmem:[%s0] sm:$0xff]
  %v19 = vld [vmem:[%s0 + $0x8] sm:$0xff]
  %v20 = vld [vmem:[%s0 + $0x10] sm:$0xff]
  %v21 = vld [vmem:[%s0 + $0x18] sm:$0xff]
  %v22 = vld [vmem:[%s0 + $0x20] sm:$0xff]
  %v23 = vld [vmem:[%s0 + $0x28] sm:$0xff]
  %v24 = vld [vmem:[%s0 + $0x30] sm:$0xff]
  %v25 = vld [vmem:[%s0 + $0x38] sm:$0xff]
  %v26 = vld [vmem:[%s0 + $0x40] sm:$0xff]
  %v27 = vld [vmem:[%s0 + $0x48] sm:$0xff]
  %v28 = vld [vmem:[%s0 + $0x50] sm:$0xff]
  %v29 = vld [vmem:[%s0 + $0x58] sm:$0xff]
  %v30 = vld [vmem:[%s0 + $0x60] sm:$0xff]
  %v31 = vld [vmem:[%s0 + $0x68] sm:$0xff]
  %v32 = vld [vmem:[%s0 + $0x70] sm:$0xff]
  %v33 = vld [vmem:[%s0 + $0x78] sm:$0xff]
  %v34 = vpack.c.bf16 %v19, %v18
  %v35 = vpack.c.bf16 %v21, %v20
  %v36 = vpack.c.bf16 %v23, %v22
  %v37 = vpack.c.bf16 %v25, %v24
  %v38 = vpack.c.bf16 %v27, %v26
  %v39 = vpack.c.bf16 %v29, %v28
  %v40 = vpack.c.bf16 %v31, %v30
  %v41 = vpack.c.bf16 %v33, %v32
  %v42 = vld [vmem:[%s2] sm:$0xf]
  %v43 = vld [vmem:[%s2 + $0x4] sm:$0xf]
  %v44 = vld [vmem:[%s2 + $0x8] sm:$0xf]
  %v45 = vld [vmem:[%s2 + $0xc] sm:$0xf]
  %v46 = vld [vmem:[%s2 + $0x10] sm:$0xf]
  %v47 = vld [vmem:[%s2 + $0x14] sm:$0xf]
  %v48 = vld [vmem:[%s2 + $0x18] sm:$0xf]
  %v49 = vld [vmem:[%s2 + $0x1c] sm:$0xf]
  %v50 = vld [vmem:[%s3] sm:$0x1]
  %v51 = vlaneseq
  %v52 = vshrl.u32 %v51, 7
  %v53 = vsub.s32 0, %v52
  %v54 = vrot.slane %v50, %v53
  %v63 = vunpack.c.l.b16 %v42
  %v64 = vunpack.c.l.b16 %v43
  %v65 = vunpack.c.l.b16 %v44
  %v66 = vunpack.c.l.b16 %v45
  %v67 = vunpack.c.l.b16 %v46
  %v68 = vunpack.c.l.b16 %v47
  %v69 = vunpack.c.l.b16 %v48
  %v70 = vunpack.c.l.b16 %v49
  %v71 = vpack.c.b16 %v64, %v63
  %v72 = vpack.c.b16 %v66, %v65
  %v73 = vpack.c.b16 %v68, %v67
  %v74 = vpack.c.b16 %v70, %v69
  %vm78 = vcmask 515072
  %v80 = vsel %vm78, %v34, 0
  %v83 = vsel %vm78, %v35, 0
  %v86 = vsel %vm78, %v36, 0
  %v89 = vsel %vm78, %v37, 0
  %v92 = vsel %vm78, %v38, 0
  %v95 = vsel %vm78, %v39, 0
  %v98 = vsel %vm78, %v40, 0
  %v101 = vsel %vm78, %v41, 0
  %vm103 = vcmask 1046528
  %vm104 = vcmask 1047552
  %v105 = vsel %vm103, 4294967295, 65535
  %v106 = vsel %vm104, %v105, 0
  %v108 = vand.u32 %v74, %v106
  %110 = vmatprep.subr.bf16.mxu0 0
  %111 = vmatpush1.bf16.msra.mxu0 0
  %112 = vmatprep.subr.bf16.mxu0 0
  %113 = vmatpush1.bf16.msra.mxu0 0
  %114 = vmatprep.subr.bf16.mxu0 0
  %115 = vmatpush1.bf16.msra.mxu0 0
  %116 = vmatprep.subr.bf16.mxu0 0
  %117 = vmatpush1.bf16.msra.mxu0 0
  %118 = vmatprep.subr.bf16.mxu0 0
  %119 = vmatpush1.bf16.msra.mxu0 %v108
  %120 = vmatprep.subr.bf16.mxu0 0
  %121 = vmatpush1.bf16.msra.mxu0 %v73
  %122 = vmatprep.subr.bf16.mxu0 0
  %123 = vmatpush1.bf16.msra.mxu0 %v72
  %124 = vmatprep.subr.bf16.mxu0 0
  %125 = vmatpush1.bf16.msra.mxu0 %v71
  %126 = vmatprep.subr.bf16.mxu0 0
  %127 = vmatpush2.bf16.msra.mxu0 0
  %128 = vmatprep.subr.bf16.mxu0 0
  %129 = vmatpush2.bf16.msra.mxu0 0
  %130 = vmatprep.subr.bf16.mxu0 0
  %131 = vmatpush2.bf16.msra.mxu0 0
  %132 = vmatprep.subr.bf16.mxu0 0
  %133 = vmatpush2.bf16.msra.mxu0 0
  %134 = vmatprep.subr.bf16.mxu0 0
  %135 = vmatpush2.bf16.msra.mxu0 0
  %136 = vmatprep.subr.bf16.mxu0 0
  %137 = vmatpush2.bf16.msra.mxu0 0
  %138 = vmatprep.subr.bf16.mxu0 0
  %139 = vmatpush2.bf16.msra.mxu0 0
  %140 = vmatprep.subr.bf16.mxu0 0
  %141 = vmatpush2.bf16.msra.mxu0 0
  %142 = vmatprep.mubr.bf16.mxu0 0
  %143 = vmatmul.mubr.bf16.gmra.mxu0 %v80
  %v144 = vpop.f32.mrf.mxu0
  %v145 = vadd.f32 %v54, %v144
  %v146 = vpop.f32.mrf.mxu0
  %v147 = vpop.f32.mrf.mxu0
  %v148 = vadd.f32 %v54, %v147
  %v149 = vpop.f32.mrf.mxu0
  %150 = vmatprep.mubr.bf16.mxu0 0
  %151 = vmatmul.mubr.bf16.gmra.mxu0 %v83
  %v152 = vpop.f32.mrf.mxu0
  %v153 = vadd.f32 %v54, %v152
  %v154 = vpop.f32.mrf.mxu0
  %v155 = vpop.f32.mrf.mxu0
  %v156 = vadd.f32 %v54, %v155
  %v157 = vpop.f32.mrf.mxu0
  %158 = vmatprep.mubr.bf16.mxu0 0
  %159 = vmatmul.mubr.bf16.gmra.mxu0 %v86
  %v160 = vpop.f32.mrf.mxu0
  %v161 = vadd.f32 %v54, %v160
  %v162 = vpop.f32.mrf.mxu0
  %v163 = vpop.f32.mrf.mxu0
  %v164 = vadd.f32 %v54, %v163
  %v165 = vpop.f32.mrf.mxu0
  %166 = vmatprep.mubr.bf16.mxu0 0
  %167 = vmatmul.mubr.bf16.gmra.mxu0 %v89
  %v168 = vpop.f32.mrf.mxu0
  %v169 = vadd.f32 %v54, %v168
  %v170 = vpop.f32.mrf.mxu0
  %v171 = vpop.f32.mrf.mxu0
  %v172 = vadd.f32 %v54, %v171
  %v173 = vpop.f32.mrf.mxu0
  %174 = vmatprep.mubr.bf16.mxu0 0
  %175 = vmatmul.mubr.bf16.gmra.mxu0 %v92
  %v176 = vpop.f32.mrf.mxu0
  %v177 = vadd.f32 %v54, %v176
  %v178 = vpop.f32.mrf.mxu0
  %v179 = vpop.f32.mrf.mxu0
  %v180 = vadd.f32 %v54, %v179
  %v181 = vpop.f32.mrf.mxu0
  %182 = vmatprep.mubr.bf16.mxu0 0
  %183 = vmatmul.mubr.bf16.gmra.mxu0 %v95
  %v184 = vpop.f32.mrf.mxu0
  %v185 = vadd.f32 %v54, %v184
  %v186 = vpop.f32.mrf.mxu0
  %v187 = vpop.f32.mrf.mxu0
  %v188 = vadd.f32 %v54, %v187
  %v189 = vpop.f32.mrf.mxu0
  %190 = vmatprep.mubr.bf16.mxu0 0
  %191 = vmatmul.mubr.bf16.gmra.mxu0 %v98
  %v192 = vpop.f32.mrf.mxu0
  %v193 = vadd.f32 %v54, %v192
  %v194 = vpop.f32.mrf.mxu0
  %v195 = vpop.f32.mrf.mxu0
  %v196 = vadd.f32 %v54, %v195
  %v197 = vpop.f32.mrf.mxu0
  %198 = vmatprep.mubr.bf16.mxu0 0
  %199 = vmatmul.mubr.bf16.gmra.mxu0 %v101
  %v200 = vpop.f32.mrf.mxu0
  %v201 = vadd.f32 %v54, %v200
  %v202 = vpop.f32.mrf.mxu0
  %v203 = vpop.f32.mrf.mxu0
  %v204 = vadd.f32 %v54, %v203
  %v205 = vpop.f32.mrf.mxu0
  %206 = vdwg.mxu0
  %v207 = vmax.f32 %v145, 0.0
  %v208 = vmax.f32 %v148, 0.0
  %v209 = vmax.f32 %v153, 0.0
  %v210 = vmax.f32 %v156, 0.0
  %v211 = vmax.f32 %v161, 0.0
  %v212 = vmax.f32 %v164, 0.0
  %v213 = vmax.f32 %v169, 0.0
  %v214 = vmax.f32 %v172, 0.0
  %v215 = vmax.f32 %v177, 0.0
  %v216 = vmax.f32 %v180, 0.0
  %v217 = vmax.f32 %v185, 0.0
  %v218 = vmax.f32 %v188, 0.0
  %v219 = vmax.f32 %v193, 0.0
  %v220 = vmax.f32 %v196, 0.0
  %v221 = vmax.f32 %v201, 0.0
  %v222 = vmax.f32 %v204, 0.0
  %v223 = vpack.c.bf16 %v208, %v207
  %v224 = vpack.c.bf16 %v210, %v209
  %v225 = vpack.c.bf16 %v212, %v211
  %v226 = vpack.c.bf16 %v214, %v213
  %v227 = vpack.c.bf16 %v216, %v215
  %v228 = vpack.c.bf16 %v218, %v217
  %v229 = vpack.c.bf16 %v220, %v219
  %v230 = vpack.c.bf16 %v222, %v221
  %v231 = vld [vmem:[%s2 + $0x20] sm:$0xf]
  %v232 = vld [vmem:[%s2 + $0x24] sm:$0xf]
  %v233 = vld [vmem:[%s2 + $0x28] sm:$0xf]
  %v234 = vld [vmem:[%s2 + $0x2c] sm:$0xf]
  %v235 = vld [vmem:[%s3 + $0x1] sm:$0x1]
  %v236 = vlaneseq
  %v237 = vshrl.u32 %v236, 7
  %v238 = vsub.s32 0, %v237
  %v239 = vrot.slane %v235, %v238
  %v244 = vunpack.c.l.b16 %v231
  %v245 = vunpack.c.l.b16 %v232
  %v246 = vunpack.c.l.b16 %v233
  %v247 = vunpack.c.l.b16 %v234
  %v248 = vpack.c.b16 %v245, %v244
  %v249 = vpack.c.b16 %v247, %v246
  %vm252 = vcmask 261120
  %v254 = vsel %vm252, %v223, 0
  %v257 = vsel %vm252, %v224, 0
  %v260 = vsel %vm252, %v225, 0
  %v263 = vsel %vm252, %v226, 0
  %v266 = vsel %vm252, %v227, 0
  %v269 = vsel %vm252, %v228, 0
  %v272 = vsel %vm252, %v229, 0
  %v275 = vsel %vm252, %v230, 0
  %277 = vmatprep.subr.bf16.mxu0 0
  %278 = vmatpush1.bf16.msra.mxu0 0
  %279 = vmatprep.subr.bf16.mxu0 0
  %280 = vmatpush1.bf16.msra.mxu0 0
  %281 = vmatprep.subr.bf16.mxu0 0
  %282 = vmatpush1.bf16.msra.mxu0 0
  %283 = vmatprep.subr.bf16.mxu0 0
  %284 = vmatpush1.bf16.msra.mxu0 0
  %285 = vmatprep.subr.bf16.mxu0 0
  %286 = vmatpush1.bf16.msra.mxu0 0
  %287 = vmatprep.subr.bf16.mxu0 0
  %288 = vmatpush1.bf16.msra.mxu0 0
  %289 = vmatprep.subr.bf16.mxu0 0
  %290 = vmatpush1.bf16.msra.mxu0 %v249
  %291 = vmatprep.subr.bf16.mxu0 0
  %292 = vmatpush1.bf16.msra.mxu0 %v248
  %293 = vmatprep.subr.bf16.mxu0 0
  %294 = vmatpush2.bf16.msra.mxu0 0
  %295 = vmatprep.subr.bf16.mxu0 0
  %296 = vmatpush2.bf16.msra.mxu0 0
  %297 = vmatprep.subr.bf16.mxu0 0
  %298 = vmatpush2.bf16.msra.mxu0 0
  %299 = vmatprep.subr.bf16.mxu0 0
  %300 = vmatpush2.bf16.msra.mxu0 0
  %301 = vmatprep.subr.bf16.mxu0 0
  %302 = vmatpush2.bf16.msra.mxu0 0
  %303 = vmatprep.subr.bf16.mxu0 0
  %304 = vmatpush2.bf16.msra.mxu0 0
  %305 = vmatprep.subr.bf16.mxu0 0
  %306 = vmatpush2.bf16.msra.mxu0 0
  %307 = vmatprep.subr.bf16.mxu0 0
  %308 = vmatpush2.bf16.msra.mxu0 0
  %309 = vmatprep.mubr.bf16.mxu0 0
  %310 = vmatmul.mubr.bf16.gmra.mxu0 %v254
  %v311 = vpop.f32.mrf.mxu0
  %v312 = vadd.f32 %v239, %v311
  %v313 = vpop.f32.mrf.mxu0
  %v314 = vpop.f32.mrf.mxu0
  %v315 = vadd.f32 %v239, %v314
  %v316 = vpop.f32.mrf.mxu0
  %317 = vmatprep.mubr.bf16.mxu0 0
  %318 = vmatmul.mubr.bf16.gmra.mxu0 %v257
  %v319 = vpop.f32.mrf.mxu0
  %v320 = vadd.f32 %v239, %v319
  %v321 = vpop.f32.mrf.mxu0
  %v322 = vpop.f32.mrf.mxu0
  %v323 = vadd.f32 %v239, %v322
  %v324 = vpop.f32.mrf.mxu0
  %325 = vmatprep.mubr.bf16.mxu0 0
  %326 = vmatmul.mubr.bf16.gmra.mxu0 %v260
  %v327 = vpop.f32.mrf.mxu0
  %v328 = vadd.f32 %v239, %v327
  %v329 = vpop.f32.mrf.mxu0
  %v330 = vpop.f32.mrf.mxu0
  %v331 = vadd.f32 %v239, %v330
  %v332 = vpop.f32.mrf.mxu0
  %333 = vmatprep.mubr.bf16.mxu0 0
  %334 = vmatmul.mubr.bf16.gmra.mxu0 %v263
  %v335 = vpop.f32.mrf.mxu0
  %v336 = vadd.f32 %v239, %v335
  %v337 = vpop.f32.mrf.mxu0
  %v338 = vpop.f32.mrf.mxu0
  %v339 = vadd.f32 %v239, %v338
  %v340 = vpop.f32.mrf.mxu0
  %341 = vmatprep.mubr.bf16.mxu0 0
  %342 = vmatmul.mubr.bf16.gmra.mxu0 %v266
  %v343 = vpop.f32.mrf.mxu0
  %v344 = vadd.f32 %v239, %v343
  %v345 = vpop.f32.mrf.mxu0
  %v346 = vpop.f32.mrf.mxu0
  %v347 = vadd.f32 %v239, %v346
  %v348 = vpop.f32.mrf.mxu0
  %349 = vmatprep.mubr.bf16.mxu0 0
  %350 = vmatmul.mubr.bf16.gmra.mxu0 %v269
  %v351 = vpop.f32.mrf.mxu0
  %v352 = vadd.f32 %v239, %v351
  %v353 = vpop.f32.mrf.mxu0
  %v354 = vpop.f32.mrf.mxu0
  %v355 = vadd.f32 %v239, %v354
  %v356 = vpop.f32.mrf.mxu0
  %357 = vmatprep.mubr.bf16.mxu0 0
  %358 = vmatmul.mubr.bf16.gmra.mxu0 %v272
  %v359 = vpop.f32.mrf.mxu0
  %v360 = vadd.f32 %v239, %v359
  %v361 = vpop.f32.mrf.mxu0
  %v362 = vpop.f32.mrf.mxu0
  %v363 = vadd.f32 %v239, %v362
  %v364 = vpop.f32.mrf.mxu0
  %365 = vmatprep.mubr.bf16.mxu0 0
  %366 = vmatmul.mubr.bf16.gmra.mxu0 %v275
  %v367 = vpop.f32.mrf.mxu0
  %v368 = vadd.f32 %v239, %v367
  %v369 = vpop.f32.mrf.mxu0
  %v370 = vpop.f32.mrf.mxu0
  %v371 = vadd.f32 %v239, %v370
  %v372 = vpop.f32.mrf.mxu0
  %373 = vdwg.mxu0
  %v374 = vmax.f32 %v312, 0.0
  %v375 = vmax.f32 %v315, 0.0
  %v376 = vmax.f32 %v320, 0.0
  %v377 = vmax.f32 %v323, 0.0
  %v378 = vmax.f32 %v328, 0.0
  %v379 = vmax.f32 %v331, 0.0
  %v380 = vmax.f32 %v336, 0.0
  %v381 = vmax.f32 %v339, 0.0
  %v382 = vmax.f32 %v344, 0.0
  %v383 = vmax.f32 %v347, 0.0
  %v384 = vmax.f32 %v352, 0.0
  %v385 = vmax.f32 %v355, 0.0
  %v386 = vmax.f32 %v360, 0.0
  %v387 = vmax.f32 %v363, 0.0
  %v388 = vmax.f32 %v368, 0.0
  %v389 = vmax.f32 %v371, 0.0
  %v390 = vpack.c.bf16 %v375, %v374
  %v391 = vpack.c.bf16 %v377, %v376
  %v392 = vpack.c.bf16 %v379, %v378
  %v393 = vpack.c.bf16 %v381, %v380
  %v394 = vpack.c.bf16 %v383, %v382
  %v395 = vpack.c.bf16 %v385, %v384
  %v396 = vpack.c.bf16 %v387, %v386
  %v397 = vpack.c.bf16 %v389, %v388
  %v398 = vld [vmem:[%s2 + $0x30] sm:$0xf]
  %v399 = vld [vmem:[%s2 + $0x34] sm:$0xf]
  %v400 = vld [vmem:[%s2 + $0x38] sm:$0xf]
  %v401 = vld [vmem:[%s2 + $0x3c] sm:$0xf]
  %v402 = vld [vmem:[%s3 + $0x2] sm:$0x1]
  %v403 = vlaneseq
  %v404 = vshrl.u32 %v403, 7
  %v405 = vsub.s32 0, %v404
  %v406 = vrot.slane %v402, %v405
  %v411 = vunpack.c.l.b16 %v398
  %v412 = vunpack.c.l.b16 %v399
  %v413 = vunpack.c.l.b16 %v400
  %v414 = vunpack.c.l.b16 %v401
  %v415 = vpack.c.b16 %v412, %v411
  %v416 = vpack.c.b16 %v414, %v413
  %v420 = vsel %vm252, %v390, 0
  %v423 = vsel %vm252, %v391, 0
  %v426 = vsel %vm252, %v392, 0
  %v429 = vsel %vm252, %v393, 0
  %v432 = vsel %vm252, %v394, 0
  %v435 = vsel %vm252, %v395, 0
  %v438 = vsel %vm252, %v396, 0
  %v441 = vsel %vm252, %v397, 0
  %443 = vmatprep.subr.bf16.mxu0 0
  %444 = vmatpush1.bf16.msra.mxu0 0
  %445 = vmatprep.subr.bf16.mxu0 0
  %446 = vmatpush1.bf16.msra.mxu0 0
  %447 = vmatprep.subr.bf16.mxu0 0
  %448 = vmatpush1.bf16.msra.mxu0 0
  %449 = vmatprep.subr.bf16.mxu0 0
  %450 = vmatpush1.bf16.msra.mxu0 0
  %451 = vmatprep.subr.bf16.mxu0 0
  %452 = vmatpush1.bf16.msra.mxu0 0
  %453 = vmatprep.subr.bf16.mxu0 0
  %454 = vmatpush1.bf16.msra.mxu0 0
  %455 = vmatprep.subr.bf16.mxu0 0
  %456 = vmatpush1.bf16.msra.mxu0 %v416
  %457 = vmatprep.subr.bf16.mxu0 0
  %458 = vmatpush1.bf16.msra.mxu0 %v415
  %459 = vmatprep.subr.bf16.mxu0 0
  %460 = vmatpush2.bf16.msra.mxu0 0
  %461 = vmatprep.subr.bf16.mxu0 0
  %462 = vmatpush2.bf16.msra.mxu0 0
  %463 = vmatprep.subr.bf16.mxu0 0
  %464 = vmatpush2.bf16.msra.mxu0 0
  %465 = vmatprep.subr.bf16.mxu0 0
  %466 = vmatpush2.bf16.msra.mxu0 0
  %467 = vmatprep.subr.bf16.mxu0 0
  %468 = vmatpush2.bf16.msra.mxu0 0
  %469 = vmatprep.subr.bf16.mxu0 0
  %470 = vmatpush2.bf16.msra.mxu0 0
  %471 = vmatprep.subr.bf16.mxu0 0
  %472 = vmatpush2.bf16.msra.mxu0 0
  %473 = vmatprep.subr.bf16.mxu0 0
  %474 = vmatpush2.bf16.msra.mxu0 0
  %475 = vmatprep.mubr.bf16.mxu0 0
  %476 = vmatmul.mubr.bf16.gmra.mxu0 %v420
  %v477 = vpop.f32.mrf.mxu0
  %v478 = vadd.f32 %v406, %v477
  %v479 = vpop.f32.mrf.mxu0
  %v480 = vpop.f32.mrf.mxu0
  %v481 = vadd.f32 %v406, %v480
  %v482 = vpop.f32.mrf.mxu0
  %483 = vmatprep.mubr.bf16.mxu0 0
  %484 = vmatmul.mubr.bf16.gmra.mxu0 %v423
  %v485 = vpop.f32.mrf.mxu0
  %v486 = vadd.f32 %v406, %v485
  %v487 = vpop.f32.mrf.mxu0
  %v488 = vpop.f32.mrf.mxu0
  %v489 = vadd.f32 %v406, %v488
  %v490 = vpop.f32.mrf.mxu0
  %491 = vmatprep.mubr.bf16.mxu0 0
  %492 = vmatmul.mubr.bf16.gmra.mxu0 %v426
  %v493 = vpop.f32.mrf.mxu0
  %v494 = vadd.f32 %v406, %v493
  %v495 = vpop.f32.mrf.mxu0
  %v496 = vpop.f32.mrf.mxu0
  %v497 = vadd.f32 %v406, %v496
  %v498 = vpop.f32.mrf.mxu0
  %499 = vmatprep.mubr.bf16.mxu0 0
  %500 = vmatmul.mubr.bf16.gmra.mxu0 %v429
  %v501 = vpop.f32.mrf.mxu0
  %v502 = vadd.f32 %v406, %v501
  %v503 = vpop.f32.mrf.mxu0
  %v504 = vpop.f32.mrf.mxu0
  %v505 = vadd.f32 %v406, %v504
  %v506 = vpop.f32.mrf.mxu0
  %507 = vmatprep.mubr.bf16.mxu0 0
  %508 = vmatmul.mubr.bf16.gmra.mxu0 %v432
  %v509 = vpop.f32.mrf.mxu0
  %v510 = vadd.f32 %v406, %v509
  %v511 = vpop.f32.mrf.mxu0
  %v512 = vpop.f32.mrf.mxu0
  %v513 = vadd.f32 %v406, %v512
  %v514 = vpop.f32.mrf.mxu0
  %515 = vmatprep.mubr.bf16.mxu0 0
  %516 = vmatmul.mubr.bf16.gmra.mxu0 %v435
  %v517 = vpop.f32.mrf.mxu0
  %v518 = vadd.f32 %v406, %v517
  %v519 = vpop.f32.mrf.mxu0
  %v520 = vpop.f32.mrf.mxu0
  %v521 = vadd.f32 %v406, %v520
  %v522 = vpop.f32.mrf.mxu0
  %523 = vmatprep.mubr.bf16.mxu0 0
  %524 = vmatmul.mubr.bf16.gmra.mxu0 %v438
  %v525 = vpop.f32.mrf.mxu0
  %v526 = vadd.f32 %v406, %v525
  %v527 = vpop.f32.mrf.mxu0
  %v528 = vpop.f32.mrf.mxu0
  %v529 = vadd.f32 %v406, %v528
  %v530 = vpop.f32.mrf.mxu0
  %531 = vmatprep.mubr.bf16.mxu0 0
  %532 = vmatmul.mubr.bf16.gmra.mxu0 %v441
  %v533 = vpop.f32.mrf.mxu0
  %v534 = vadd.f32 %v406, %v533
  %v535 = vpop.f32.mrf.mxu0
  %v536 = vpop.f32.mrf.mxu0
  %v537 = vadd.f32 %v406, %v536
  %v538 = vpop.f32.mrf.mxu0
  %539 = vdwg.mxu0
  %v540 = vmax.f32 %v478, 0.0
  %v541 = vmax.f32 %v481, 0.0
  %v542 = vmax.f32 %v486, 0.0
  %v543 = vmax.f32 %v489, 0.0
  %v544 = vmax.f32 %v494, 0.0
  %v545 = vmax.f32 %v497, 0.0
  %v546 = vmax.f32 %v502, 0.0
  %v547 = vmax.f32 %v505, 0.0
  %v548 = vmax.f32 %v510, 0.0
  %v549 = vmax.f32 %v513, 0.0
  %v550 = vmax.f32 %v518, 0.0
  %v551 = vmax.f32 %v521, 0.0
  %v552 = vmax.f32 %v526, 0.0
  %v553 = vmax.f32 %v529, 0.0
  %v554 = vmax.f32 %v534, 0.0
  %v555 = vmax.f32 %v537, 0.0
  %v556 = vpack.c.bf16 %v541, %v540
  %v557 = vpack.c.bf16 %v543, %v542
  %v558 = vpack.c.bf16 %v545, %v544
  %v559 = vpack.c.bf16 %v547, %v546
  %v560 = vpack.c.bf16 %v549, %v548
  %v561 = vpack.c.bf16 %v551, %v550
  %v562 = vpack.c.bf16 %v553, %v552
  %v563 = vpack.c.bf16 %v555, %v554
  %v564 = vld [vmem:[%s2 + $0x40] sm:$0xf]
  %v565 = vld [vmem:[%s2 + $0x44] sm:$0xf]
  %v566 = vld [vmem:[%s2 + $0x48] sm:$0xf]
  %v567 = vld [vmem:[%s2 + $0x4c] sm:$0xf]
  %v568 = vld [vmem:[%s3 + $0x3] sm:$0x1]
  %v569 = vlaneseq
  %v570 = vshrl.u32 %v569, 7
  %v571 = vsub.s32 0, %v570
  %v572 = vrot.slane %v568, %v571
  %v577 = vunpack.c.l.b16 %v564
  %v578 = vunpack.c.l.b16 %v565
  %v579 = vunpack.c.l.b16 %v566
  %v580 = vunpack.c.l.b16 %v567
  %v581 = vpack.c.b16 %v578, %v577
  %v582 = vpack.c.b16 %v580, %v579
  %v586 = vsel %vm252, %v556, 0
  %v589 = vsel %vm252, %v557, 0
  %v592 = vsel %vm252, %v558, 0
  %v595 = vsel %vm252, %v559, 0
  %v598 = vsel %vm252, %v560, 0
  %v601 = vsel %vm252, %v561, 0
  %v604 = vsel %vm252, %v562, 0
  %v607 = vsel %vm252, %v563, 0
  %609 = vmatprep.subr.bf16.mxu0 0
  %610 = vmatpush1.bf16.msra.mxu0 0
  %611 = vmatprep.subr.bf16.mxu0 0
  %612 = vmatpush1.bf16.msra.mxu0 0
  %613 = vmatprep.subr.bf16.mxu0 0
  %614 = vmatpush1.bf16.msra.mxu0 0
  %615 = vmatprep.subr.bf16.mxu0 0
  %616 = vmatpush1.bf16.msra.mxu0 0
  %617 = vmatprep.subr.bf16.mxu0 0
  %618 = vmatpush1.bf16.msra.mxu0 0
  %619 = vmatprep.subr.bf16.mxu0 0
  %620 = vmatpush1.bf16.msra.mxu0 0
  %621 = vmatprep.subr.bf16.mxu0 0
  %622 = vmatpush1.bf16.msra.mxu0 %v582
  %623 = vmatprep.subr.bf16.mxu0 0
  %624 = vmatpush1.bf16.msra.mxu0 %v581
  %625 = vmatprep.subr.bf16.mxu0 0
  %626 = vmatpush2.bf16.msra.mxu0 0
  %627 = vmatprep.subr.bf16.mxu0 0
  %628 = vmatpush2.bf16.msra.mxu0 0
  %629 = vmatprep.subr.bf16.mxu0 0
  %630 = vmatpush2.bf16.msra.mxu0 0
  %631 = vmatprep.subr.bf16.mxu0 0
  %632 = vmatpush2.bf16.msra.mxu0 0
  %633 = vmatprep.subr.bf16.mxu0 0
  %634 = vmatpush2.bf16.msra.mxu0 0
  %635 = vmatprep.subr.bf16.mxu0 0
  %636 = vmatpush2.bf16.msra.mxu0 0
  %637 = vmatprep.subr.bf16.mxu0 0
  %638 = vmatpush2.bf16.msra.mxu0 0
  %639 = vmatprep.subr.bf16.mxu0 0
  %640 = vmatpush2.bf16.msra.mxu0 0
  %641 = vmatprep.mubr.bf16.mxu0 0
  %642 = vmatmul.mubr.bf16.gmra.mxu0 %v586
  %v643 = vpop.f32.mrf.mxu0
  %v644 = vadd.f32 %v572, %v643
  %v645 = vpop.f32.mrf.mxu0
  %v646 = vpop.f32.mrf.mxu0
  %v647 = vadd.f32 %v572, %v646
  %v648 = vpop.f32.mrf.mxu0
  %649 = vmatprep.mubr.bf16.mxu0 0
  %650 = vmatmul.mubr.bf16.gmra.mxu0 %v589
  %v651 = vpop.f32.mrf.mxu0
  %v652 = vadd.f32 %v572, %v651
  %v653 = vpop.f32.mrf.mxu0
  %v654 = vpop.f32.mrf.mxu0
  %v655 = vadd.f32 %v572, %v654
  %v656 = vpop.f32.mrf.mxu0
  %657 = vmatprep.mubr.bf16.mxu0 0
  %658 = vmatmul.mubr.bf16.gmra.mxu0 %v592
  %v659 = vpop.f32.mrf.mxu0
  %v660 = vadd.f32 %v572, %v659
  %v661 = vpop.f32.mrf.mxu0
  %v662 = vpop.f32.mrf.mxu0
  %v663 = vadd.f32 %v572, %v662
  %v664 = vpop.f32.mrf.mxu0
  %665 = vmatprep.mubr.bf16.mxu0 0
  %666 = vmatmul.mubr.bf16.gmra.mxu0 %v595
  %v667 = vpop.f32.mrf.mxu0
  %v668 = vadd.f32 %v572, %v667
  %v669 = vpop.f32.mrf.mxu0
  %v670 = vpop.f32.mrf.mxu0
  %v671 = vadd.f32 %v572, %v670
  %v672 = vpop.f32.mrf.mxu0
  %673 = vmatprep.mubr.bf16.mxu0 0
  %674 = vmatmul.mubr.bf16.gmra.mxu0 %v598
  %v675 = vpop.f32.mrf.mxu0
  %v676 = vadd.f32 %v572, %v675
  %v677 = vpop.f32.mrf.mxu0
  %v678 = vpop.f32.mrf.mxu0
  %v679 = vadd.f32 %v572, %v678
  %v680 = vpop.f32.mrf.mxu0
  %681 = vmatprep.mubr.bf16.mxu0 0
  %682 = vmatmul.mubr.bf16.gmra.mxu0 %v601
  %v683 = vpop.f32.mrf.mxu0
  %v684 = vadd.f32 %v572, %v683
  %v685 = vpop.f32.mrf.mxu0
  %v686 = vpop.f32.mrf.mxu0
  %v687 = vadd.f32 %v572, %v686
  %v688 = vpop.f32.mrf.mxu0
  %689 = vmatprep.mubr.bf16.mxu0 0
  %690 = vmatmul.mubr.bf16.gmra.mxu0 %v604
  %v691 = vpop.f32.mrf.mxu0
  %v692 = vadd.f32 %v572, %v691
  %v693 = vpop.f32.mrf.mxu0
  %v694 = vpop.f32.mrf.mxu0
  %v695 = vadd.f32 %v572, %v694
  %v696 = vpop.f32.mrf.mxu0
  %697 = vmatprep.mubr.bf16.mxu0 0
  %698 = vmatmul.mubr.bf16.gmra.mxu0 %v607
  %v699 = vpop.f32.mrf.mxu0
  %v700 = vadd.f32 %v572, %v699
  %v701 = vpop.f32.mrf.mxu0
  %v702 = vpop.f32.mrf.mxu0
  %v703 = vadd.f32 %v572, %v702
  %v704 = vpop.f32.mrf.mxu0
  %705 = vdwg.mxu0
  %v706 = vmax.f32 %v644, 0.0
  %v707 = vmax.f32 %v647, 0.0
  %v708 = vmax.f32 %v652, 0.0
  %v709 = vmax.f32 %v655, 0.0
  %v710 = vmax.f32 %v660, 0.0
  %v711 = vmax.f32 %v663, 0.0
  %v712 = vmax.f32 %v668, 0.0
  %v713 = vmax.f32 %v671, 0.0
  %v714 = vmax.f32 %v676, 0.0
  %v715 = vmax.f32 %v679, 0.0
  %v716 = vmax.f32 %v684, 0.0
  %v717 = vmax.f32 %v687, 0.0
  %v718 = vmax.f32 %v692, 0.0
  %v719 = vmax.f32 %v695, 0.0
  %v720 = vmax.f32 %v700, 0.0
  %v721 = vmax.f32 %v703, 0.0
  %v722 = vpack.c.bf16 %v707, %v706
  %v723 = vpack.c.bf16 %v709, %v708
  %v724 = vpack.c.bf16 %v711, %v710
  %v725 = vpack.c.bf16 %v713, %v712
  %v726 = vpack.c.bf16 %v715, %v714
  %v727 = vpack.c.bf16 %v717, %v716
  %v728 = vpack.c.bf16 %v719, %v718
  %v729 = vpack.c.bf16 %v721, %v720
  %738 = vrot.lane.b32.xlu0 %v34, 32
  %v739 = vpop.permute.xlu0 %738
  %740 = vrot.lane.b32.xlu0 %v35, 32
  %v741 = vpop.permute.xlu0 %740
  %742 = vrot.lane.b32.xlu0 %v36, 32
  %v743 = vpop.permute.xlu0 %742
  %744 = vrot.lane.b32.xlu0 %v37, 32
  %v745 = vpop.permute.xlu0 %744
  %746 = vrot.lane.b32.xlu0 %v38, 32
  %v747 = vpop.permute.xlu0 %746
  %748 = vrot.lane.b32.xlu0 %v39, 32
  %v749 = vpop.permute.xlu0 %748
  %750 = vrot.lane.b32.xlu0 %v40, 32
  %v751 = vpop.permute.xlu0 %750
  %752 = vrot.lane.b32.xlu0 %v41, 32
  %v753 = vpop.permute.xlu0 %752
  %v756 = vsel %vm252, %v722, %v739
  %v759 = vsel %vm252, %v723, %v741
  %v762 = vsel %vm252, %v724, %v743
  %v765 = vsel %vm252, %v725, %v745
  %v768 = vsel %vm252, %v726, %v747
  %v771 = vsel %vm252, %v727, %v749
  %v774 = vsel %vm252, %v728, %v751
  %v777 = vsel %vm252, %v729, %v753
  %v778 = vld [vmem:[%s2 + $0x50] sm:$0xf]
  %v779 = vld [vmem:[%s2 + $0x54] sm:$0xf]
  %v780 = vld [vmem:[%s2 + $0x58] sm:$0xf]
  %v781 = vld [vmem:[%s2 + $0x5c] sm:$0xf]
  %v782 = vld [vmem:[%s2 + $0x60] sm:$0xf]
  %v783 = vld [vmem:[%s2 + $0x64] sm:$0xf]
  %v784 = vld [vmem:[%s2 + $0x68] sm:$0xf]
  %v785 = vld [vmem:[%s2 + $0x6c] sm:$0xf]
  %v786 = vld [vmem:[%s2 + $0x70] sm:$0xf]
  %v787 = vld [vmem:[%s2 + $0x74] sm:$0xf]
  %v788 = vld [vmem:[%s2 + $0x78] sm:$0xf]
  %v789 = vld [vmem:[%s2 + $0x7c] sm:$0xf]
  %v790 = vld [vmem:[%s3 + $0x4] sm:$0x1]
  %v791 = vlaneseq
  %v792 = vshrl.u32 %v791, 7
  %v793 = vsub.s32 0, %v792
  %v794 = vrot.slane %v790, %v793
  %v807 = vunpack.c.l.b16 %v778
  %v808 = vunpack.c.l.b16 %v779
  %v809 = vunpack.c.l.b16 %v780
  %v810 = vunpack.c.l.b16 %v781
  %v811 = vunpack.c.l.b16 %v782
  %v812 = vunpack.c.l.b16 %v783
  %v813 = vunpack.c.l.b16 %v784
  %v814 = vunpack.c.l.b16 %v785
  %v815 = vunpack.c.l.b16 %v786
  %v816 = vunpack.c.l.b16 %v787
  %v817 = vunpack.c.l.b16 %v788
  %v818 = vunpack.c.l.b16 %v789
  %v819 = vpack.c.b16 %v808, %v807
  %v820 = vpack.c.b16 %v810, %v809
  %v821 = vpack.c.b16 %v812, %v811
  %v822 = vpack.c.b16 %v814, %v813
  %v823 = vpack.c.b16 %v816, %v815
  %v824 = vpack.c.b16 %v818, %v817
  %vm830 = vcmask 777216
  %v831 = vsel %vm830, %v756, 0
  %v833 = vsel %vm830, %v759, 0
  %v835 = vsel %vm830, %v762, 0
  %v837 = vsel %vm830, %v765, 0
  %v839 = vsel %vm830, %v768, 0
  %v841 = vsel %vm830, %v771, 0
  %v843 = vsel %vm830, %v774, 0
  %v845 = vsel %vm830, %v777, 0
  %v848 = vand.u32 %v824, %v106
  %850 = vmatprep.subr.bf16.mxu0 0
  %851 = vmatpush1.bf16.msra.mxu0 0
  %852 = vmatprep.subr.bf16.mxu0 0
  %853 = vmatpush1.bf16.msra.mxu0 0
  %854 = vmatprep.subr.bf16.mxu0 0
  %855 = vmatpush1.bf16.msra.mxu0 %v848
  %856 = vmatprep.subr.bf16.mxu0 0
  %857 = vmatpush1.bf16.msra.mxu0 %v823
  %858 = vmatprep.subr.bf16.mxu0 0
  %859 = vmatpush1.bf16.msra.mxu0 %v822
  %860 = vmatprep.subr.bf16.mxu0 0
  %861 = vmatpush1.bf16.msra.mxu0 %v821
  %862 = vmatprep.subr.bf16.mxu0 0
  %863 = vmatpush1.bf16.msra.mxu0 %v820
  %864 = vmatprep.subr.bf16.mxu0 0
  %865 = vmatpush1.bf16.msra.mxu0 %v819
  %866 = vmatprep.subr.bf16.mxu0 0
  %867 = vmatpush2.bf16.msra.mxu0 0
  %868 = vmatprep.subr.bf16.mxu0 0
  %869 = vmatpush2.bf16.msra.mxu0 0
  %870 = vmatprep.subr.bf16.mxu0 0
  %871 = vmatpush2.bf16.msra.mxu0 0
  %872 = vmatprep.subr.bf16.mxu0 0
  %873 = vmatpush2.bf16.msra.mxu0 0
  %874 = vmatprep.subr.bf16.mxu0 0
  %875 = vmatpush2.bf16.msra.mxu0 0
  %876 = vmatprep.subr.bf16.mxu0 0
  %877 = vmatpush2.bf16.msra.mxu0 0
  %878 = vmatprep.subr.bf16.mxu0 0
  %879 = vmatpush2.bf16.msra.mxu0 0
  %880 = vmatprep.subr.bf16.mxu0 0
  %881 = vmatpush2.bf16.msra.mxu0 0
  %882 = vmatprep.mubr.bf16.mxu0 0
  %883 = vmatmul.mubr.bf16.gmra.mxu0 %v831
  %v884 = vpop.f32.mrf.mxu0
  %v885 = vadd.f32 %v794, %v884
  %v886 = vpop.f32.mrf.mxu0
  %v887 = vpop.f32.mrf.mxu0
  %v888 = vadd.f32 %v794, %v887
  %v889 = vpop.f32.mrf.mxu0
  %890 = vmatprep.mubr.bf16.mxu0 0
  %891 = vmatmul.mubr.bf16.gmra.mxu0 %v833
  %v892 = vpop.f32.mrf.mxu0
  %v893 = vadd.f32 %v794, %v892
  %v894 = vpop.f32.mrf.mxu0
  %v895 = vpop.f32.mrf.mxu0
  %v896 = vadd.f32 %v794, %v895
  %v897 = vpop.f32.mrf.mxu0
  %898 = vmatprep.mubr.bf16.mxu0 0
  %899 = vmatmul.mubr.bf16.gmra.mxu0 %v835
  %v900 = vpop.f32.mrf.mxu0
  %v901 = vadd.f32 %v794, %v900
  %v902 = vpop.f32.mrf.mxu0
  %v903 = vpop.f32.mrf.mxu0
  %v904 = vadd.f32 %v794, %v903
  %v905 = vpop.f32.mrf.mxu0
  %906 = vmatprep.mubr.bf16.mxu0 0
  %907 = vmatmul.mubr.bf16.gmra.mxu0 %v837
  %v908 = vpop.f32.mrf.mxu0
  %v909 = vadd.f32 %v794, %v908
  %v910 = vpop.f32.mrf.mxu0
  %v911 = vpop.f32.mrf.mxu0
  %v912 = vadd.f32 %v794, %v911
  %v913 = vpop.f32.mrf.mxu0
  %914 = vmatprep.mubr.bf16.mxu0 0
  %915 = vmatmul.mubr.bf16.gmra.mxu0 %v839
  %v916 = vpop.f32.mrf.mxu0
  %v917 = vadd.f32 %v794, %v916
  %v918 = vpop.f32.mrf.mxu0
  %v919 = vpop.f32.mrf.mxu0
  %v920 = vadd.f32 %v794, %v919
  %v921 = vpop.f32.mrf.mxu0
  %922 = vmatprep.mubr.bf16.mxu0 0
  %923 = vmatmul.mubr.bf16.gmra.mxu0 %v841
  %v924 = vpop.f32.mrf.mxu0
  %v925 = vadd.f32 %v794, %v924
  %v926 = vpop.f32.mrf.mxu0
  %v927 = vpop.f32.mrf.mxu0
  %v928 = vadd.f32 %v794, %v927
  %v929 = vpop.f32.mrf.mxu0
  %930 = vmatprep.mubr.bf16.mxu0 0
  %931 = vmatmul.mubr.bf16.gmra.mxu0 %v843
  %v932 = vpop.f32.mrf.mxu0
  %v933 = vadd.f32 %v794, %v932
  %v934 = vpop.f32.mrf.mxu0
  %v935 = vpop.f32.mrf.mxu0
  %v936 = vadd.f32 %v794, %v935
  %v937 = vpop.f32.mrf.mxu0
  %938 = vmatprep.mubr.bf16.mxu0 0
  %939 = vmatmul.mubr.bf16.gmra.mxu0 %v845
  %v940 = vpop.f32.mrf.mxu0
  %v941 = vadd.f32 %v794, %v940
  %v942 = vpop.f32.mrf.mxu0
  %v943 = vpop.f32.mrf.mxu0
  %v944 = vadd.f32 %v794, %v943
  %v945 = vpop.f32.mrf.mxu0
  %946 = vdwg.mxu0
  %v947 = vmax.f32 %v885, 0.0
  %v948 = vmax.f32 %v888, 0.0
  %v949 = vmax.f32 %v893, 0.0
  %v950 = vmax.f32 %v896, 0.0
  %v951 = vmax.f32 %v901, 0.0
  %v952 = vmax.f32 %v904, 0.0
  %v953 = vmax.f32 %v909, 0.0
  %v954 = vmax.f32 %v912, 0.0
  %v955 = vmax.f32 %v917, 0.0
  %v956 = vmax.f32 %v920, 0.0
  %v957 = vmax.f32 %v925, 0.0
  %v958 = vmax.f32 %v928, 0.0
  %v959 = vmax.f32 %v933, 0.0
  %v960 = vmax.f32 %v936, 0.0
  %v961 = vmax.f32 %v941, 0.0
  %v962 = vmax.f32 %v944, 0.0
  %v963 = vpack.c.bf16 %v948, %v947
  %v964 = vpack.c.bf16 %v950, %v949
  %v965 = vpack.c.bf16 %v952, %v951
  %v966 = vpack.c.bf16 %v954, %v953
  %v967 = vpack.c.bf16 %v956, %v955
  %v968 = vpack.c.bf16 %v958, %v957
  %v969 = vpack.c.bf16 %v960, %v959
  %v970 = vpack.c.bf16 %v962, %v961
  %v971 = vld [vmem:[%s2 + $0x80] sm:$0xf]
  %v972 = vld [vmem:[%s2 + $0x84] sm:$0xf]
  %v973 = vld [vmem:[%s2 + $0x88] sm:$0xf]
  %v974 = vld [vmem:[%s2 + $0x8c] sm:$0xf]
  %v975 = vld [vmem:[%s3 + $0x5] sm:$0x1]
  %v976 = vlaneseq
  %v977 = vshrl.u32 %v976, 7
  %v978 = vsub.s32 0, %v977
  %v979 = vrot.slane %v975, %v978
  %v984 = vunpack.c.l.b16 %v971
  %v985 = vunpack.c.l.b16 %v972
  %v986 = vunpack.c.l.b16 %v973
  %v987 = vunpack.c.l.b16 %v974
  %v988 = vpack.c.b16 %v985, %v984
  %v989 = vpack.c.b16 %v987, %v986
  %v993 = vsel %vm252, %v963, 0
  %v996 = vsel %vm252, %v964, 0
  %v999 = vsel %vm252, %v965, 0
  %v1002 = vsel %vm252, %v966, 0
  %v1005 = vsel %vm252, %v967, 0
  %v1008 = vsel %vm252, %v968, 0
  %v1011 = vsel %vm252, %v969, 0
  %v1014 = vsel %vm252, %v970, 0
  %1016 = vmatprep.subr.bf16.mxu0 0
  %1017 = vmatpush1.bf16.msra.mxu0 0
  %1018 = vmatprep.subr.bf16.mxu0 0
  %1019 = vmatpush1.bf16.msra.mxu0 0
  %1020 = vmatprep.subr.bf16.mxu0 0
  %1021 = vmatpush1.bf16.msra.mxu0 0
  %1022 = vmatprep.subr.bf16.mxu0 0
  %1023 = vmatpush1.bf16.msra.mxu0 0
  %1024 = vmatprep.subr.bf16.mxu0 0
  %1025 = vmatpush1.bf16.msra.mxu0 0
  %1026 = vmatprep.subr.bf16.mxu0 0
  %1027 = vmatpush1.bf16.msra.mxu0 0
  %1028 = vmatprep.subr.bf16.mxu0 0
  %1029 = vmatpush1.bf16.msra.mxu0 %v989
  %1030 = vmatprep.subr.bf16.mxu0 0
  %1031 = vmatpush1.bf16.msra.mxu0 %v988
  %1032 = vmatprep.subr.bf16.mxu0 0
  %1033 = vmatpush2.bf16.msra.mxu0 0
  %1034 = vmatprep.subr.bf16.mxu0 0
  %1035 = vmatpush2.bf16.msra.mxu0 0
  %1036 = vmatprep.subr.bf16.mxu0 0
  %1037 = vmatpush2.bf16.msra.mxu0 0
  %1038 = vmatprep.subr.bf16.mxu0 0
  %1039 = vmatpush2.bf16.msra.mxu0 0
  %1040 = vmatprep.subr.bf16.mxu0 0
  %1041 = vmatpush2.bf16.msra.mxu0 0
  %1042 = vmatprep.subr.bf16.mxu0 0
  %1043 = vmatpush2.bf16.msra.mxu0 0
  %1044 = vmatprep.subr.bf16.mxu0 0
  %1045 = vmatpush2.bf16.msra.mxu0 0
  %1046 = vmatprep.subr.bf16.mxu0 0
  %1047 = vmatpush2.bf16.msra.mxu0 0
  %1048 = vmatprep.mubr.bf16.mxu0 0
  %1049 = vmatmul.mubr.bf16.gmra.mxu0 %v993
  %v1050 = vpop.f32.mrf.mxu0
  %v1051 = vadd.f32 %v979, %v1050
  %v1052 = vpop.f32.mrf.mxu0
  %v1053 = vpop.f32.mrf.mxu0
  %v1054 = vadd.f32 %v979, %v1053
  %v1055 = vpop.f32.mrf.mxu0
  %1056 = vmatprep.mubr.bf16.mxu0 0
  %1057 = vmatmul.mubr.bf16.gmra.mxu0 %v996
  %v1058 = vpop.f32.mrf.mxu0
  %v1059 = vadd.f32 %v979, %v1058
  %v1060 = vpop.f32.mrf.mxu0
  %v1061 = vpop.f32.mrf.mxu0
  %v1062 = vadd.f32 %v979, %v1061
  %v1063 = vpop.f32.mrf.mxu0
  %1064 = vmatprep.mubr.bf16.mxu0 0
  %1065 = vmatmul.mubr.bf16.gmra.mxu0 %v999
  %v1066 = vpop.f32.mrf.mxu0
  %v1067 = vadd.f32 %v979, %v1066
  %v1068 = vpop.f32.mrf.mxu0
  %v1069 = vpop.f32.mrf.mxu0
  %v1070 = vadd.f32 %v979, %v1069
  %v1071 = vpop.f32.mrf.mxu0
  %1072 = vmatprep.mubr.bf16.mxu0 0
  %1073 = vmatmul.mubr.bf16.gmra.mxu0 %v1002
  %v1074 = vpop.f32.mrf.mxu0
  %v1075 = vadd.f32 %v979, %v1074
  %v1076 = vpop.f32.mrf.mxu0
  %v1077 = vpop.f32.mrf.mxu0
  %v1078 = vadd.f32 %v979, %v1077
  %v1079 = vpop.f32.mrf.mxu0
  %1080 = vmatprep.mubr.bf16.mxu0 0
  %1081 = vmatmul.mubr.bf16.gmra.mxu0 %v1005
  %v1082 = vpop.f32.mrf.mxu0
  %v1083 = vadd.f32 %v979, %v1082
  %v1084 = vpop.f32.mrf.mxu0
  %v1085 = vpop.f32.mrf.mxu0
  %v1086 = vadd.f32 %v979, %v1085
  %v1087 = vpop.f32.mrf.mxu0
  %1088 = vmatprep.mubr.bf16.mxu0 0
  %1089 = vmatmul.mubr.bf16.gmra.mxu0 %v1008
  %v1090 = vpop.f32.mrf.mxu0
  %v1091 = vadd.f32 %v979, %v1090
  %v1092 = vpop.f32.mrf.mxu0
  %v1093 = vpop.f32.mrf.mxu0
  %v1094 = vadd.f32 %v979, %v1093
  %v1095 = vpop.f32.mrf.mxu0
  %1096 = vmatprep.mubr.bf16.mxu0 0
  %1097 = vmatmul.mubr.bf16.gmra.mxu0 %v1011
  %v1098 = vpop.f32.mrf.mxu0
  %v1099 = vadd.f32 %v979, %v1098
  %v1100 = vpop.f32.mrf.mxu0
  %v1101 = vpop.f32.mrf.mxu0
  %v1102 = vadd.f32 %v979, %v1101
  %v1103 = vpop.f32.mrf.mxu0
  %1104 = vmatprep.mubr.bf16.mxu0 0
  %1105 = vmatmul.mubr.bf16.gmra.mxu0 %v1014
  %v1106 = vpop.f32.mrf.mxu0
  %v1107 = vadd.f32 %v979, %v1106
  %v1108 = vpop.f32.mrf.mxu0
  %v1109 = vpop.f32.mrf.mxu0
  %v1110 = vadd.f32 %v979, %v1109
  %v1111 = vpop.f32.mrf.mxu0
  %1112 = vdwg.mxu0
  %v1113 = vmax.f32 %v1051, 0.0
  %v1114 = vmax.f32 %v1054, 0.0
  %v1115 = vmax.f32 %v1059, 0.0
  %v1116 = vmax.f32 %v1062, 0.0
  %v1117 = vmax.f32 %v1067, 0.0
  %v1118 = vmax.f32 %v1070, 0.0
  %v1119 = vmax.f32 %v1075, 0.0
  %v1120 = vmax.f32 %v1078, 0.0
  %v1121 = vmax.f32 %v1083, 0.0
  %v1122 = vmax.f32 %v1086, 0.0
  %v1123 = vmax.f32 %v1091, 0.0
  %v1124 = vmax.f32 %v1094, 0.0
  %v1125 = vmax.f32 %v1099, 0.0
  %v1126 = vmax.f32 %v1102, 0.0
  %v1127 = vmax.f32 %v1107, 0.0
  %v1128 = vmax.f32 %v1110, 0.0
  %v1129 = vpack.c.bf16 %v1114, %v1113
  %v1130 = vpack.c.bf16 %v1116, %v1115
  %v1131 = vpack.c.bf16 %v1118, %v1117
  %v1132 = vpack.c.bf16 %v1120, %v1119
  %v1133 = vpack.c.bf16 %v1122, %v1121
  %v1134 = vpack.c.bf16 %v1124, %v1123
  %v1135 = vpack.c.bf16 %v1126, %v1125
  %v1136 = vpack.c.bf16 %v1128, %v1127
  %v1137 = vld [vmem:[%s2 + $0x90] sm:$0xf]
  %v1138 = vld [vmem:[%s2 + $0x94] sm:$0xf]
  %v1139 = vld [vmem:[%s2 + $0x98] sm:$0xf]
  %v1140 = vld [vmem:[%s2 + $0x9c] sm:$0xf]
  %v1141 = vld [vmem:[%s3 + $0x6] sm:$0x1]
  %v1142 = vlaneseq
  %v1143 = vshrl.u32 %v1142, 7
  %v1144 = vsub.s32 0, %v1143
  %v1145 = vrot.slane %v1141, %v1144
  %v1150 = vunpack.c.l.b16 %v1137
  %v1151 = vunpack.c.l.b16 %v1138
  %v1152 = vunpack.c.l.b16 %v1139
  %v1153 = vunpack.c.l.b16 %v1140
  %v1154 = vpack.c.b16 %v1151, %v1150
  %v1155 = vpack.c.b16 %v1153, %v1152
  %v1159 = vsel %vm252, %v1129, 0
  %v1162 = vsel %vm252, %v1130, 0
  %v1165 = vsel %vm252, %v1131, 0
  %v1168 = vsel %vm252, %v1132, 0
  %v1171 = vsel %vm252, %v1133, 0
  %v1174 = vsel %vm252, %v1134, 0
  %v1177 = vsel %vm252, %v1135, 0
  %v1180 = vsel %vm252, %v1136, 0
  %1182 = vmatprep.subr.bf16.mxu0 0
  %1183 = vmatpush1.bf16.msra.mxu0 0
  %1184 = vmatprep.subr.bf16.mxu0 0
  %1185 = vmatpush1.bf16.msra.mxu0 0
  %1186 = vmatprep.subr.bf16.mxu0 0
  %1187 = vmatpush1.bf16.msra.mxu0 0
  %1188 = vmatprep.subr.bf16.mxu0 0
  %1189 = vmatpush1.bf16.msra.mxu0 0
  %1190 = vmatprep.subr.bf16.mxu0 0
  %1191 = vmatpush1.bf16.msra.mxu0 0
  %1192 = vmatprep.subr.bf16.mxu0 0
  %1193 = vmatpush1.bf16.msra.mxu0 0
  %1194 = vmatprep.subr.bf16.mxu0 0
  %1195 = vmatpush1.bf16.msra.mxu0 %v1155
  %1196 = vmatprep.subr.bf16.mxu0 0
  %1197 = vmatpush1.bf16.msra.mxu0 %v1154
  %1198 = vmatprep.subr.bf16.mxu0 0
  %1199 = vmatpush2.bf16.msra.mxu0 0
  %1200 = vmatprep.subr.bf16.mxu0 0
  %1201 = vmatpush2.bf16.msra.mxu0 0
  %1202 = vmatprep.subr.bf16.mxu0 0
  %1203 = vmatpush2.bf16.msra.mxu0 0
  %1204 = vmatprep.subr.bf16.mxu0 0
  %1205 = vmatpush2.bf16.msra.mxu0 0
  %1206 = vmatprep.subr.bf16.mxu0 0
  %1207 = vmatpush2.bf16.msra.mxu0 0
  %1208 = vmatprep.subr.bf16.mxu0 0
  %1209 = vmatpush2.bf16.msra.mxu0 0
  %1210 = vmatprep.subr.bf16.mxu0 0
  %1211 = vmatpush2.bf16.msra.mxu0 0
  %1212 = vmatprep.subr.bf16.mxu0 0
  %1213 = vmatpush2.bf16.msra.mxu0 0
  %1214 = vmatprep.mubr.bf16.mxu0 0
  %1215 = vmatmul.mubr.bf16.gmra.mxu0 %v1159
  %v1216 = vpop.f32.mrf.mxu0
  %v1217 = vadd.f32 %v1145, %v1216
  %v1218 = vpop.f32.mrf.mxu0
  %v1219 = vpop.f32.mrf.mxu0
  %v1220 = vadd.f32 %v1145, %v1219
  %v1221 = vpop.f32.mrf.mxu0
  %1222 = vmatprep.mubr.bf16.mxu0 0
  %1223 = vmatmul.mubr.bf16.gmra.mxu0 %v1162
  %v1224 = vpop.f32.mrf.mxu0
  %v1225 = vadd.f32 %v1145, %v1224
  %v1226 = vpop.f32.mrf.mxu0
  %v1227 = vpop.f32.mrf.mxu0
  %v1228 = vadd.f32 %v1145, %v1227
  %v1229 = vpop.f32.mrf.mxu0
  %1230 = vmatprep.mubr.bf16.mxu0 0
  %1231 = vmatmul.mubr.bf16.gmra.mxu0 %v1165
  %v1232 = vpop.f32.mrf.mxu0
  %v1233 = vadd.f32 %v1145, %v1232
  %v1234 = vpop.f32.mrf.mxu0
  %v1235 = vpop.f32.mrf.mxu0
  %v1236 = vadd.f32 %v1145, %v1235
  %v1237 = vpop.f32.mrf.mxu0
  %1238 = vmatprep.mubr.bf16.mxu0 0
  %1239 = vmatmul.mubr.bf16.gmra.mxu0 %v1168
  %v1240 = vpop.f32.mrf.mxu0
  %v1241 = vadd.f32 %v1145, %v1240
  %v1242 = vpop.f32.mrf.mxu0
  %v1243 = vpop.f32.mrf.mxu0
  %v1244 = vadd.f32 %v1145, %v1243
  %v1245 = vpop.f32.mrf.mxu0
  %1246 = vmatprep.mubr.bf16.mxu0 0
  %1247 = vmatmul.mubr.bf16.gmra.mxu0 %v1171
  %v1248 = vpop.f32.mrf.mxu0
  %v1249 = vadd.f32 %v1145, %v1248
  %v1250 = vpop.f32.mrf.mxu0
  %v1251 = vpop.f32.mrf.mxu0
  %v1252 = vadd.f32 %v1145, %v1251
  %v1253 = vpop.f32.mrf.mxu0
  %1254 = vmatprep.mubr.bf16.mxu0 0
  %1255 = vmatmul.mubr.bf16.gmra.mxu0 %v1174
  %v1256 = vpop.f32.mrf.mxu0
  %v1257 = vadd.f32 %v1145, %v1256
  %v1258 = vpop.f32.mrf.mxu0
  %v1259 = vpop.f32.mrf.mxu0
  %v1260 = vadd.f32 %v1145, %v1259
  %v1261 = vpop.f32.mrf.mxu0
  %1262 = vmatprep.mubr.bf16.mxu0 0
  %1263 = vmatmul.mubr.bf16.gmra.mxu0 %v1177
  %v1264 = vpop.f32.mrf.mxu0
  %v1265 = vadd.f32 %v1145, %v1264
  %v1266 = vpop.f32.mrf.mxu0
  %v1267 = vpop.f32.mrf.mxu0
  %v1268 = vadd.f32 %v1145, %v1267
  %v1269 = vpop.f32.mrf.mxu0
  %1270 = vmatprep.mubr.bf16.mxu0 0
  %1271 = vmatmul.mubr.bf16.gmra.mxu0 %v1180
  %v1272 = vpop.f32.mrf.mxu0
  %v1273 = vadd.f32 %v1145, %v1272
  %v1274 = vpop.f32.mrf.mxu0
  %v1275 = vpop.f32.mrf.mxu0
  %v1276 = vadd.f32 %v1145, %v1275
  %v1277 = vpop.f32.mrf.mxu0
  %1278 = vdwg.mxu0
  %v1279 = vmax.f32 %v1217, 0.0
  %v1280 = vmax.f32 %v1220, 0.0
  %v1281 = vmax.f32 %v1225, 0.0
  %v1282 = vmax.f32 %v1228, 0.0
  %v1283 = vmax.f32 %v1233, 0.0
  %v1284 = vmax.f32 %v1236, 0.0
  %v1285 = vmax.f32 %v1241, 0.0
  %v1286 = vmax.f32 %v1244, 0.0
  %v1287 = vmax.f32 %v1249, 0.0
  %v1288 = vmax.f32 %v1252, 0.0
  %v1289 = vmax.f32 %v1257, 0.0
  %v1290 = vmax.f32 %v1260, 0.0
  %v1291 = vmax.f32 %v1265, 0.0
  %v1292 = vmax.f32 %v1268, 0.0
  %v1293 = vmax.f32 %v1273, 0.0
  %v1294 = vmax.f32 %v1276, 0.0
  %v1295 = vpack.c.bf16 %v1280, %v1279
  %v1296 = vpack.c.bf16 %v1282, %v1281
  %v1297 = vpack.c.bf16 %v1284, %v1283
  %v1298 = vpack.c.bf16 %v1286, %v1285
  %v1299 = vpack.c.bf16 %v1288, %v1287
  %v1300 = vpack.c.bf16 %v1290, %v1289
  %v1301 = vpack.c.bf16 %v1292, %v1291
  %v1302 = vpack.c.bf16 %v1294, %v1293
  %v1303 = vld [vmem:[%s2 + $0xa0] sm:$0xf]
  %v1304 = vld [vmem:[%s2 + $0xa4] sm:$0xf]
  %v1305 = vld [vmem:[%s2 + $0xa8] sm:$0xf]
  %v1306 = vld [vmem:[%s2 + $0xac] sm:$0xf]
  %v1307 = vld [vmem:[%s3 + $0x7] sm:$0x1]
  %v1308 = vlaneseq
  %v1309 = vshrl.u32 %v1308, 7
  %v1310 = vsub.s32 0, %v1309
  %v1311 = vrot.slane %v1307, %v1310
  %v1316 = vunpack.c.l.b16 %v1303
  %v1317 = vunpack.c.l.b16 %v1304
  %v1318 = vunpack.c.l.b16 %v1305
  %v1319 = vunpack.c.l.b16 %v1306
  %v1320 = vpack.c.b16 %v1317, %v1316
  %v1321 = vpack.c.b16 %v1319, %v1318
  %v1325 = vsel %vm252, %v1295, 0
  %v1328 = vsel %vm252, %v1296, 0
  %v1331 = vsel %vm252, %v1297, 0
  %v1334 = vsel %vm252, %v1298, 0
  %v1337 = vsel %vm252, %v1299, 0
  %v1340 = vsel %vm252, %v1300, 0
  %v1343 = vsel %vm252, %v1301, 0
  %v1346 = vsel %vm252, %v1302, 0
  %1348 = vmatprep.subr.bf16.mxu0 0
  %1349 = vmatpush1.bf16.msra.mxu0 0
  %1350 = vmatprep.subr.bf16.mxu0 0
  %1351 = vmatpush1.bf16.msra.mxu0 0
  %1352 = vmatprep.subr.bf16.mxu0 0
  %1353 = vmatpush1.bf16.msra.mxu0 0
  %1354 = vmatprep.subr.bf16.mxu0 0
  %1355 = vmatpush1.bf16.msra.mxu0 0
  %1356 = vmatprep.subr.bf16.mxu0 0
  %1357 = vmatpush1.bf16.msra.mxu0 0
  %1358 = vmatprep.subr.bf16.mxu0 0
  %1359 = vmatpush1.bf16.msra.mxu0 0
  %1360 = vmatprep.subr.bf16.mxu0 0
  %1361 = vmatpush1.bf16.msra.mxu0 %v1321
  %1362 = vmatprep.subr.bf16.mxu0 0
  %1363 = vmatpush1.bf16.msra.mxu0 %v1320
  %1364 = vmatprep.subr.bf16.mxu0 0
  %1365 = vmatpush2.bf16.msra.mxu0 0
  %1366 = vmatprep.subr.bf16.mxu0 0
  %1367 = vmatpush2.bf16.msra.mxu0 0
  %1368 = vmatprep.subr.bf16.mxu0 0
  %1369 = vmatpush2.bf16.msra.mxu0 0
  %1370 = vmatprep.subr.bf16.mxu0 0
  %1371 = vmatpush2.bf16.msra.mxu0 0
  %1372 = vmatprep.subr.bf16.mxu0 0
  %1373 = vmatpush2.bf16.msra.mxu0 0
  %1374 = vmatprep.subr.bf16.mxu0 0
  %1375 = vmatpush2.bf16.msra.mxu0 0
  %1376 = vmatprep.subr.bf16.mxu0 0
  %1377 = vmatpush2.bf16.msra.mxu0 0
  %1378 = vmatprep.subr.bf16.mxu0 0
  %1379 = vmatpush2.bf16.msra.mxu0 0
  %1380 = vmatprep.mubr.bf16.mxu0 0
  %1381 = vmatmul.mubr.bf16.gmra.mxu0 %v1325
  %v1382 = vpop.f32.mrf.mxu0
  %v1383 = vadd.f32 %v1311, %v1382
  %v1384 = vpop.f32.mrf.mxu0
  %v1385 = vpop.f32.mrf.mxu0
  %v1386 = vadd.f32 %v1311, %v1385
  %v1387 = vpop.f32.mrf.mxu0
  %1388 = vmatprep.mubr.bf16.mxu0 0
  %1389 = vmatmul.mubr.bf16.gmra.mxu0 %v1328
  %v1390 = vpop.f32.mrf.mxu0
  %v1391 = vadd.f32 %v1311, %v1390
  %v1392 = vpop.f32.mrf.mxu0
  %v1393 = vpop.f32.mrf.mxu0
  %v1394 = vadd.f32 %v1311, %v1393
  %v1395 = vpop.f32.mrf.mxu0
  %1396 = vmatprep.mubr.bf16.mxu0 0
  %1397 = vmatmul.mubr.bf16.gmra.mxu0 %v1331
  %v1398 = vpop.f32.mrf.mxu0
  %v1399 = vadd.f32 %v1311, %v1398
  %v1400 = vpop.f32.mrf.mxu0
  %v1401 = vpop.f32.mrf.mxu0
  %v1402 = vadd.f32 %v1311, %v1401
  %v1403 = vpop.f32.mrf.mxu0
  %1404 = vmatprep.mubr.bf16.mxu0 0
  %1405 = vmatmul.mubr.bf16.gmra.mxu0 %v1334
  %v1406 = vpop.f32.mrf.mxu0
  %v1407 = vadd.f32 %v1311, %v1406
  %v1408 = vpop.f32.mrf.mxu0
  %v1409 = vpop.f32.mrf.mxu0
  %v1410 = vadd.f32 %v1311, %v1409
  %v1411 = vpop.f32.mrf.mxu0
  %1412 = vmatprep.mubr.bf16.mxu0 0
  %1413 = vmatmul.mubr.bf16.gmra.mxu0 %v1337
  %v1414 = vpop.f32.mrf.mxu0
  %v1415 = vadd.f32 %v1311, %v1414
  %v1416 = vpop.f32.mrf.mxu0
  %v1417 = vpop.f32.mrf.mxu0
  %v1418 = vadd.f32 %v1311, %v1417
  %v1419 = vpop.f32.mrf.mxu0
  %1420 = vmatprep.mubr.bf16.mxu0 0
  %1421 = vmatmul.mubr.bf16.gmra.mxu0 %v1340
  %v1422 = vpop.f32.mrf.mxu0
  %v1423 = vadd.f32 %v1311, %v1422
  %v1424 = vpop.f32.mrf.mxu0
  %v1425 = vpop.f32.mrf.mxu0
  %v1426 = vadd.f32 %v1311, %v1425
  %v1427 = vpop.f32.mrf.mxu0
  %1428 = vmatprep.mubr.bf16.mxu0 0
  %1429 = vmatmul.mubr.bf16.gmra.mxu0 %v1343
  %v1430 = vpop.f32.mrf.mxu0
  %v1431 = vadd.f32 %v1311, %v1430
  %v1432 = vpop.f32.mrf.mxu0
  %v1433 = vpop.f32.mrf.mxu0
  %v1434 = vadd.f32 %v1311, %v1433
  %v1435 = vpop.f32.mrf.mxu0
  %1436 = vmatprep.mubr.bf16.mxu0 0
  %1437 = vmatmul.mubr.bf16.gmra.mxu0 %v1346
  %v1438 = vpop.f32.mrf.mxu0
  %v1439 = vadd.f32 %v1311, %v1438
  %v1440 = vpop.f32.mrf.mxu0
  %v1441 = vpop.f32.mrf.mxu0
  %v1442 = vadd.f32 %v1311, %v1441
  %v1443 = vpop.f32.mrf.mxu0
  %1444 = vdwg.mxu0
  %v1445 = vmax.f32 %v1383, 0.0
  %v1446 = vmax.f32 %v1386, 0.0
  %v1447 = vmax.f32 %v1391, 0.0
  %v1448 = vmax.f32 %v1394, 0.0
  %v1449 = vmax.f32 %v1399, 0.0
  %v1450 = vmax.f32 %v1402, 0.0
  %v1451 = vmax.f32 %v1407, 0.0
  %v1452 = vmax.f32 %v1410, 0.0
  %v1453 = vmax.f32 %v1415, 0.0
  %v1454 = vmax.f32 %v1418, 0.0
  %v1455 = vmax.f32 %v1423, 0.0
  %v1456 = vmax.f32 %v1426, 0.0
  %v1457 = vmax.f32 %v1431, 0.0
  %v1458 = vmax.f32 %v1434, 0.0
  %v1459 = vmax.f32 %v1439, 0.0
  %v1460 = vmax.f32 %v1442, 0.0
  %v1461 = vpack.c.bf16 %v1446, %v1445
  %v1462 = vpack.c.bf16 %v1448, %v1447
  %v1463 = vpack.c.bf16 %v1450, %v1449
  %v1464 = vpack.c.bf16 %v1452, %v1451
  %v1465 = vpack.c.bf16 %v1454, %v1453
  %v1466 = vpack.c.bf16 %v1456, %v1455
  %v1467 = vpack.c.bf16 %v1458, %v1457
  %v1468 = vpack.c.bf16 %v1460, %v1459
  %v1469 = vld [vmem:[%s2 + $0xb0] sm:$0xf]
  %v1470 = vld [vmem:[%s2 + $0xb4] sm:$0xf]
  %v1471 = vld [vmem:[%s2 + $0xb8] sm:$0xf]
  %v1472 = vld [vmem:[%s2 + $0xbc] sm:$0xf]
  %v1473 = vld [vmem:[%s3 + $0x8] sm:$0x1]
  %v1474 = vlaneseq
  %v1475 = vshrl.u32 %v1474, 7
  %v1476 = vsub.s32 0, %v1475
  %v1477 = vrot.slane %v1473, %v1476
  %v1482 = vunpack.c.l.b16 %v1469
  %v1483 = vunpack.c.l.b16 %v1470
  %v1484 = vunpack.c.l.b16 %v1471
  %v1485 = vunpack.c.l.b16 %v1472
  %v1486 = vpack.c.b16 %v1483, %v1482
  %v1487 = vpack.c.b16 %v1485, %v1484
  %v1491 = vsel %vm252, %v1461, 0
  %v1494 = vsel %vm252, %v1462, 0
  %v1497 = vsel %vm252, %v1463, 0
  %v1500 = vsel %vm252, %v1464, 0
  %v1503 = vsel %vm252, %v1465, 0
  %v1506 = vsel %vm252, %v1466, 0
  %v1509 = vsel %vm252, %v1467, 0
  %v1512 = vsel %vm252, %v1468, 0
  %1514 = vmatprep.subr.bf16.mxu0 0
  %1515 = vmatpush1.bf16.msra.mxu0 0
  %1516 = vmatprep.subr.bf16.mxu0 0
  %1517 = vmatpush1.bf16.msra.mxu0 0
  %1518 = vmatprep.subr.bf16.mxu0 0
  %1519 = vmatpush1.bf16.msra.mxu0 0
  %1520 = vmatprep.subr.bf16.mxu0 0
  %1521 = vmatpush1.bf16.msra.mxu0 0
  %1522 = vmatprep.subr.bf16.mxu0 0
  %1523 = vmatpush1.bf16.msra.mxu0 0
  %1524 = vmatprep.subr.bf16.mxu0 0
  %1525 = vmatpush1.bf16.msra.mxu0 0
  %1526 = vmatprep.subr.bf16.mxu0 0
  %1527 = vmatpush1.bf16.msra.mxu0 %v1487
  %1528 = vmatprep.subr.bf16.mxu0 0
  %1529 = vmatpush1.bf16.msra.mxu0 %v1486
  %1530 = vmatprep.subr.bf16.mxu0 0
  %1531 = vmatpush2.bf16.msra.mxu0 0
  %1532 = vmatprep.subr.bf16.mxu0 0
  %1533 = vmatpush2.bf16.msra.mxu0 0
  %1534 = vmatprep.subr.bf16.mxu0 0
  %1535 = vmatpush2.bf16.msra.mxu0 0
  %1536 = vmatprep.subr.bf16.mxu0 0
  %1537 = vmatpush2.bf16.msra.mxu0 0
  %1538 = vmatprep.subr.bf16.mxu0 0
  %1539 = vmatpush2.bf16.msra.mxu0 0
  %1540 = vmatprep.subr.bf16.mxu0 0
  %1541 = vmatpush2.bf16.msra.mxu0 0
  %1542 = vmatprep.subr.bf16.mxu0 0
  %1543 = vmatpush2.bf16.msra.mxu0 0
  %1544 = vmatprep.subr.bf16.mxu0 0
  %1545 = vmatpush2.bf16.msra.mxu0 0
  %1546 = vmatprep.mubr.bf16.mxu0 0
  %1547 = vmatmul.mubr.bf16.gmra.mxu0 %v1491
  %v1548 = vpop.f32.mrf.mxu0
  %v1549 = vadd.f32 %v1477, %v1548
  %v1550 = vpop.f32.mrf.mxu0
  %v1551 = vpop.f32.mrf.mxu0
  %v1552 = vadd.f32 %v1477, %v1551
  %v1553 = vpop.f32.mrf.mxu0
  %1554 = vmatprep.mubr.bf16.mxu0 0
  %1555 = vmatmul.mubr.bf16.gmra.mxu0 %v1494
  %v1556 = vpop.f32.mrf.mxu0
  %v1557 = vadd.f32 %v1477, %v1556
  %v1558 = vpop.f32.mrf.mxu0
  %v1559 = vpop.f32.mrf.mxu0
  %v1560 = vadd.f32 %v1477, %v1559
  %v1561 = vpop.f32.mrf.mxu0
  %1562 = vmatprep.mubr.bf16.mxu0 0
  %1563 = vmatmul.mubr.bf16.gmra.mxu0 %v1497
  %v1564 = vpop.f32.mrf.mxu0
  %v1565 = vadd.f32 %v1477, %v1564
  %v1566 = vpop.f32.mrf.mxu0
  %v1567 = vpop.f32.mrf.mxu0
  %v1568 = vadd.f32 %v1477, %v1567
  %v1569 = vpop.f32.mrf.mxu0
  %1570 = vmatprep.mubr.bf16.mxu0 0
  %1571 = vmatmul.mubr.bf16.gmra.mxu0 %v1500
  %v1572 = vpop.f32.mrf.mxu0
  %v1573 = vadd.f32 %v1477, %v1572
  %v1574 = vpop.f32.mrf.mxu0
  %v1575 = vpop.f32.mrf.mxu0
  %v1576 = vadd.f32 %v1477, %v1575
  %v1577 = vpop.f32.mrf.mxu0
  %1578 = vmatprep.mubr.bf16.mxu0 0
  %1579 = vmatmul.mubr.bf16.gmra.mxu0 %v1503
  %v1580 = vpop.f32.mrf.mxu0
  %v1581 = vadd.f32 %v1477, %v1580
  %v1582 = vpop.f32.mrf.mxu0
  %v1583 = vpop.f32.mrf.mxu0
  %v1584 = vadd.f32 %v1477, %v1583
  %v1585 = vpop.f32.mrf.mxu0
  %1586 = vmatprep.mubr.bf16.mxu0 0
  %1587 = vmatmul.mubr.bf16.gmra.mxu0 %v1506
  %v1588 = vpop.f32.mrf.mxu0
  %v1589 = vadd.f32 %v1477, %v1588
  %v1590 = vpop.f32.mrf.mxu0
  %v1591 = vpop.f32.mrf.mxu0
  %v1592 = vadd.f32 %v1477, %v1591
  %v1593 = vpop.f32.mrf.mxu0
  %1594 = vmatprep.mubr.bf16.mxu0 0
  %1595 = vmatmul.mubr.bf16.gmra.mxu0 %v1509
  %v1596 = vpop.f32.mrf.mxu0
  %v1597 = vadd.f32 %v1477, %v1596
  %v1598 = vpop.f32.mrf.mxu0
  %v1599 = vpop.f32.mrf.mxu0
  %v1600 = vadd.f32 %v1477, %v1599
  %v1601 = vpop.f32.mrf.mxu0
  %1602 = vmatprep.mubr.bf16.mxu0 0
  %1603 = vmatmul.mubr.bf16.gmra.mxu0 %v1512
  %v1604 = vpop.f32.mrf.mxu0
  %v1605 = vadd.f32 %v1477, %v1604
  %v1606 = vpop.f32.mrf.mxu0
  %v1607 = vpop.f32.mrf.mxu0
  %v1608 = vadd.f32 %v1477, %v1607
  %v1609 = vpop.f32.mrf.mxu0
  %1610 = vdwg.mxu0
  %1627 = vrot.lane.b32.xlu0 %v1549, 99
  %v1628 = vpop.permute.xlu0 %1627
  %1629 = vrot.lane.b32.xlu0 %v1552, 99
  %v1630 = vpop.permute.xlu0 %1629
  %1631 = vrot.lane.b32.xlu0 %v1557, 99
  %v1632 = vpop.permute.xlu0 %1631
  %1633 = vrot.lane.b32.xlu0 %v1560, 99
  %v1634 = vpop.permute.xlu0 %1633
  %1635 = vrot.lane.b32.xlu0 %v1565, 99
  %v1636 = vpop.permute.xlu0 %1635
  %1637 = vrot.lane.b32.xlu0 %v1568, 99
  %v1638 = vpop.permute.xlu0 %1637
  %1639 = vrot.lane.b32.xlu0 %v1573, 99
  %v1640 = vpop.permute.xlu0 %1639
  %1641 = vrot.lane.b32.xlu0 %v1576, 99
  %v1642 = vpop.permute.xlu0 %1641
  %1643 = vrot.lane.b32.xlu0 %v1581, 99
  %v1644 = vpop.permute.xlu0 %1643
  %1645 = vrot.lane.b32.xlu0 %v1584, 99
  %v1646 = vpop.permute.xlu0 %1645
  %1647 = vrot.lane.b32.xlu0 %v1589, 99
  %v1648 = vpop.permute.xlu0 %1647
  %1649 = vrot.lane.b32.xlu0 %v1592, 99
  %v1650 = vpop.permute.xlu0 %1649
  %1651 = vrot.lane.b32.xlu0 %v1597, 99
  %v1652 = vpop.permute.xlu0 %1651
  %1653 = vrot.lane.b32.xlu0 %v1600, 99
  %v1654 = vpop.permute.xlu0 %1653
  %1655 = vrot.lane.b32.xlu0 %v1605, 99
  %v1656 = vpop.permute.xlu0 %1655
  %1657 = vrot.lane.b32.xlu0 %v1608, 99
  %v1658 = vpop.permute.xlu0 %1657
  %vm1675 = vcmask 31768
  %1676 = vst.msk [vmem:[%s4] sm:$0xff] %vm1675, %v1628
  %1677 = vst.msk [vmem:[%s4 + $0x8] sm:$0xff] %vm1675, %v1630
  %1678 = vst.msk [vmem:[%s4 + $0x10] sm:$0xff] %vm1675, %v1632
  %1679 = vst.msk [vmem:[%s4 + $0x18] sm:$0xff] %vm1675, %v1634
  %1680 = vst.msk [vmem:[%s4 + $0x20] sm:$0xff] %vm1675, %v1636
  %1681 = vst.msk [vmem:[%s4 + $0x28] sm:$0xff] %vm1675, %v1638
  %1682 = vst.msk [vmem:[%s4 + $0x30] sm:$0xff] %vm1675, %v1640
  %1683 = vst.msk [vmem:[%s4 + $0x38] sm:$0xff] %vm1675, %v1642
  %1684 = vst.msk [vmem:[%s4 + $0x40] sm:$0xff] %vm1675, %v1644
  %1685 = vst.msk [vmem:[%s4 + $0x48] sm:$0xff] %vm1675, %v1646
  %1686 = vst.msk [vmem:[%s4 + $0x50] sm:$0xff] %vm1675, %v1648
  %1687 = vst.msk [vmem:[%s4 + $0x58] sm:$0xff] %vm1675, %v1650
  %1688 = vst.msk [vmem:[%s4 + $0x60] sm:$0xff] %vm1675, %v1652
  %1689 = vst.msk [vmem:[%s4 + $0x68] sm:$0xff] %vm1675, %v1654
  %1690 = vst.msk [vmem:[%s4 + $0x70] sm:$0xff] %vm1675, %v1656
  %1691 = vst.msk [vmem:[%s4 + $0x78] sm:$0xff] %vm1675, %v1658
  %v1692 = vpack.c.bf16 %v1552, %v1549
  %v1693 = vpack.c.bf16 %v1560, %v1557
  %v1694 = vpack.c.bf16 %v1568, %v1565
  %v1695 = vpack.c.bf16 %v1576, %v1573
  %v1696 = vpack.c.bf16 %v1584, %v1581
  %v1697 = vpack.c.bf16 %v1592, %v1589
  %v1698 = vpack.c.bf16 %v1600, %v1597
  %v1699 = vpack.c.bf16 %v1608, %v1605
  %v1700 = vld [vmem:[%s1] sm:$0xff]
  %v1701 = vld [vmem:[%s1 + $0x8] sm:$0xff]
  %v1702 = vld [vmem:[%s1 + $0x10] sm:$0xff]
  %v1703 = vld [vmem:[%s1 + $0x18] sm:$0xff]
  %v1704 = vld [vmem:[%s1 + $0x20] sm:$0xff]
  %v1705 = vld [vmem:[%s1 + $0x28] sm:$0xff]
  %v1706 = vld [vmem:[%s1 + $0x30] sm:$0xff]
  %v1707 = vld [vmem:[%s1 + $0x38] sm:$0xff]
  %v1708 = vld [vmem:[%s1 + $0x40] sm:$0xff]
  %v1709 = vld [vmem:[%s1 + $0x48] sm:$0xff]
  %v1710 = vld [vmem:[%s1 + $0x50] sm:$0xff]
  %v1711 = vld [vmem:[%s1 + $0x58] sm:$0xff]
  %v1712 = vld [vmem:[%s1 + $0x60] sm:$0xff]
  %v1713 = vld [vmem:[%s1 + $0x68] sm:$0xff]
  %v1714 = vld [vmem:[%s1 + $0x70] sm:$0xff]
  %v1715 = vld [vmem:[%s1 + $0x78] sm:$0xff]
  %v1716 = vpack.c.bf16 %v1701, %v1700
  %v1717 = vpack.c.bf16 %v1703, %v1702
  %v1718 = vpack.c.bf16 %v1705, %v1704
  %v1719 = vpack.c.bf16 %v1707, %v1706
  %v1720 = vpack.c.bf16 %v1709, %v1708
  %v1721 = vpack.c.bf16 %v1711, %v1710
  %v1722 = vpack.c.bf16 %v1713, %v1712
  %v1723 = vpack.c.bf16 %v1715, %v1714
  %1732 = vrot.lane.b32.xlu0 %v1716, 32
  %v1733 = vpop.permute.xlu0 %1732
  %1734 = vrot.lane.b32.xlu0 %v1717, 32
  %v1735 = vpop.permute.xlu0 %1734
  %1736 = vrot.lane.b32.xlu0 %v1718, 32
  %v1737 = vpop.permute.xlu0 %1736
  %1738 = vrot.lane.b32.xlu0 %v1719, 32
  %v1739 = vpop.permute.xlu0 %1738
  %1740 = vrot.lane.b32.xlu0 %v1720, 32
  %v1741 = vpop.permute.xlu0 %1740
  %1742 = vrot.lane.b32.xlu0 %v1721, 32
  %v1743 = vpop.permute.xlu0 %1742
  %1744 = vrot.lane.b32.xlu0 %v1722, 32
  %v1745 = vpop.permute.xlu0 %1744
  %1746 = vrot.lane.b32.xlu0 %v1723, 32
  %v1747 = vpop.permute.xlu0 %1746
  %v1750 = vsel %vm252, %v1692, %v1733
  %v1753 = vsel %vm252, %v1693, %v1735
  %v1756 = vsel %vm252, %v1694, %v1737
  %v1759 = vsel %vm252, %v1695, %v1739
  %v1762 = vsel %vm252, %v1696, %v1741
  %v1765 = vsel %vm252, %v1697, %v1743
  %v1768 = vsel %vm252, %v1698, %v1745
  %v1771 = vsel %vm252, %v1699, %v1747
  %v1772 = vld [vmem:[%s2 + $0xc0] sm:$0xf]
  %v1773 = vld [vmem:[%s2 + $0xc4] sm:$0xf]
  %v1774 = vld [vmem:[%s2 + $0xc8] sm:$0xf]
  %v1775 = vld [vmem:[%s2 + $0xcc] sm:$0xf]
  %v1776 = vld [vmem:[%s2 + $0xd0] sm:$0xf]
  %v1777 = vld [vmem:[%s2 + $0xd4] sm:$0xf]
  %v1778 = vld [vmem:[%s2 + $0xd8] sm:$0xf]
  %v1779 = vld [vmem:[%s2 + $0xdc] sm:$0x3]
  %v1780 = vld [vmem:[%s3 + $0x9] sm:$0x1]
  %v1781 = vlaneseq
  %v1782 = vshrl.u32 %v1781, 7
  %v1783 = vsub.s32 0, %v1782
  %v1784 = vrot.slane %v1780, %v1783
  %v1793 = vunpack.c.l.b16 %v1772
  %v1794 = vunpack.c.l.b16 %v1773
  %v1795 = vunpack.c.l.b16 %v1774
  %v1796 = vunpack.c.l.b16 %v1775
  %v1797 = vunpack.c.l.b16 %v1776
  %v1798 = vunpack.c.l.b16 %v1777
  %v1799 = vunpack.c.l.b16 %v1778
  %v1800 = vunpack.c.l.b16 %v1779
  %v1801 = vpack.c.b16 %v1794, %v1793
  %v1802 = vpack.c.b16 %v1796, %v1795
  %v1803 = vpack.c.b16 %v1798, %v1797
  %v1804 = vpack.c.b16 %v1800, %v1799
  %vm1808 = vcmask 482304
  %v1809 = vsel %vm1808, %v1750, 0
  %v1811 = vsel %vm1808, %v1753, 0
  %v1813 = vsel %vm1808, %v1756, 0
  %v1815 = vsel %vm1808, %v1759, 0
  %v1817 = vsel %vm1808, %v1762, 0
  %v1819 = vsel %vm1808, %v1765, 0
  %v1821 = vsel %vm1808, %v1768, 0
  %v1823 = vsel %vm1808, %v1771, 0
  %vm1825 = vcmask 1044480
  %vm1826 = vcmask 1045504
  %v1827 = vsel %vm1825, 4294967295, 65535
  %v1828 = vsel %vm1826, %v1827, 0
  %v1830 = vand.u32 %v1804, %v1828
  %1832 = vmatprep.subr.bf16.mxu0 0
  %1833 = vmatpush1.bf16.msra.mxu0 0
  %1834 = vmatprep.subr.bf16.mxu0 0
  %1835 = vmatpush1.bf16.msra.mxu0 0
  %1836 = vmatprep.subr.bf16.mxu0 0
  %1837 = vmatpush1.bf16.msra.mxu0 0
  %1838 = vmatprep.subr.bf16.mxu0 0
  %1839 = vmatpush1.bf16.msra.mxu0 0
  %1840 = vmatprep.subr.bf16.mxu0 0
  %1841 = vmatpush1.bf16.msra.mxu0 %v1830
  %1842 = vmatprep.subr.bf16.mxu0 0
  %1843 = vmatpush1.bf16.msra.mxu0 %v1803
  %1844 = vmatprep.subr.bf16.mxu0 0
  %1845 = vmatpush1.bf16.msra.mxu0 %v1802
  %1846 = vmatprep.subr.bf16.mxu0 0
  %1847 = vmatpush1.bf16.msra.mxu0 %v1801
  %1848 = vmatprep.subr.bf16.mxu0 0
  %1849 = vmatpush2.bf16.msra.mxu0 0
  %1850 = vmatprep.subr.bf16.mxu0 0
  %1851 = vmatpush2.bf16.msra.mxu0 0
  %1852 = vmatprep.subr.bf16.mxu0 0
  %1853 = vmatpush2.bf16.msra.mxu0 0
  %1854 = vmatprep.subr.bf16.mxu0 0
  %1855 = vmatpush2.bf16.msra.mxu0 0
  %1856 = vmatprep.subr.bf16.mxu0 0
  %1857 = vmatpush2.bf16.msra.mxu0 0
  %1858 = vmatprep.subr.bf16.mxu0 0
  %1859 = vmatpush2.bf16.msra.mxu0 0
  %1860 = vmatprep.subr.bf16.mxu0 0
  %1861 = vmatpush2.bf16.msra.mxu0 0
  %1862 = vmatprep.subr.bf16.mxu0 0
  %1863 = vmatpush2.bf16.msra.mxu0 0
  %1864 = vmatprep.mubr.bf16.mxu0 0
  %1865 = vmatmul.mubr.bf16.gmra.mxu0 %v1809
  %v1866 = vpop.f32.mrf.mxu0
  %v1867 = vadd.f32 %v1784, %v1866
  %v1868 = vpop.f32.mrf.mxu0
  %v1869 = vpop.f32.mrf.mxu0
  %v1870 = vadd.f32 %v1784, %v1869
  %v1871 = vpop.f32.mrf.mxu0
  %1872 = vmatprep.mubr.bf16.mxu0 0
  %1873 = vmatmul.mubr.bf16.gmra.mxu0 %v1811
  %v1874 = vpop.f32.mrf.mxu0
  %v1875 = vadd.f32 %v1784, %v1874
  %v1876 = vpop.f32.mrf.mxu0
  %v1877 = vpop.f32.mrf.mxu0
  %v1878 = vadd.f32 %v1784, %v1877
  %v1879 = vpop.f32.mrf.mxu0
  %1880 = vmatprep.mubr.bf16.mxu0 0
  %1881 = vmatmul.mubr.bf16.gmra.mxu0 %v1813
  %v1882 = vpop.f32.mrf.mxu0
  %v1883 = vadd.f32 %v1784, %v1882
  %v1884 = vpop.f32.mrf.mxu0
  %v1885 = vpop.f32.mrf.mxu0
  %v1886 = vadd.f32 %v1784, %v1885
  %v1887 = vpop.f32.mrf.mxu0
  %1888 = vmatprep.mubr.bf16.mxu0 0
  %1889 = vmatmul.mubr.bf16.gmra.mxu0 %v1815
  %v1890 = vpop.f32.mrf.mxu0
  %v1891 = vadd.f32 %v1784, %v1890
  %v1892 = vpop.f32.mrf.mxu0
  %v1893 = vpop.f32.mrf.mxu0
  %v1894 = vadd.f32 %v1784, %v1893
  %v1895 = vpop.f32.mrf.mxu0
  %1896 = vmatprep.mubr.bf16.mxu0 0
  %1897 = vmatmul.mubr.bf16.gmra.mxu0 %v1817
  %v1898 = vpop.f32.mrf.mxu0
  %v1899 = vadd.f32 %v1784, %v1898
  %v1900 = vpop.f32.mrf.mxu0
  %v1901 = vpop.f32.mrf.mxu0
  %v1902 = vadd.f32 %v1784, %v1901
  %v1903 = vpop.f32.mrf.mxu0
  %1904 = vmatprep.mubr.bf16.mxu0 0
  %1905 = vmatmul.mubr.bf16.gmra.mxu0 %v1819
  %v1906 = vpop.f32.mrf.mxu0
  %v1907 = vadd.f32 %v1784, %v1906
  %v1908 = vpop.f32.mrf.mxu0
  %v1909 = vpop.f32.mrf.mxu0
  %v1910 = vadd.f32 %v1784, %v1909
  %v1911 = vpop.f32.mrf.mxu0
  %1912 = vmatprep.mubr.bf16.mxu0 0
  %1913 = vmatmul.mubr.bf16.gmra.mxu0 %v1821
  %v1914 = vpop.f32.mrf.mxu0
  %v1915 = vadd.f32 %v1784, %v1914
  %v1916 = vpop.f32.mrf.mxu0
  %v1917 = vpop.f32.mrf.mxu0
  %v1918 = vadd.f32 %v1784, %v1917
  %v1919 = vpop.f32.mrf.mxu0
  %1920 = vmatprep.mubr.bf16.mxu0 0
  %1921 = vmatmul.mubr.bf16.gmra.mxu0 %v1823
  %v1922 = vpop.f32.mrf.mxu0
  %v1923 = vadd.f32 %v1784, %v1922
  %v1924 = vpop.f32.mrf.mxu0
  %v1925 = vpop.f32.mrf.mxu0
  %v1926 = vadd.f32 %v1784, %v1925
  %v1927 = vpop.f32.mrf.mxu0
  %1928 = vdwg.mxu0
  %v1929 = vmax.f32 %v1867, 0.0
  %v1930 = vmax.f32 %v1870, 0.0
  %v1931 = vmax.f32 %v1875, 0.0
  %v1932 = vmax.f32 %v1878, 0.0
  %v1933 = vmax.f32 %v1883, 0.0
  %v1934 = vmax.f32 %v1886, 0.0
  %v1935 = vmax.f32 %v1891, 0.0
  %v1936 = vmax.f32 %v1894, 0.0
  %v1937 = vmax.f32 %v1899, 0.0
  %v1938 = vmax.f32 %v1902, 0.0
  %v1939 = vmax.f32 %v1907, 0.0
  %v1940 = vmax.f32 %v1910, 0.0
  %v1941 = vmax.f32 %v1915, 0.0
  %v1942 = vmax.f32 %v1918, 0.0
  %v1943 = vmax.f32 %v1923, 0.0
  %v1944 = vmax.f32 %v1926, 0.0
  %v1945 = vpack.c.bf16 %v1930, %v1929
  %v1946 = vpack.c.bf16 %v1932, %v1931
  %v1947 = vpack.c.bf16 %v1934, %v1933
  %v1948 = vpack.c.bf16 %v1936, %v1935
  %v1949 = vpack.c.bf16 %v1938, %v1937
  %v1950 = vpack.c.bf16 %v1940, %v1939
  %v1951 = vpack.c.bf16 %v1942, %v1941
  %v1952 = vpack.c.bf16 %v1944, %v1943
  %v1953 = vld [vmem:[%s2 + $0xe0] sm:$0xf]
  %v1954 = vld [vmem:[%s2 + $0xe4] sm:$0xf]
  %v1955 = vld [vmem:[%s3 + $0xa] sm:$0x1]
  %v1956 = vlaneseq
  %v1957 = vshrl.u32 %v1956, 7
  %v1958 = vsub.s32 0, %v1957
  %v1959 = vrot.slane %v1955, %v1958
  %v1962 = vunpack.c.l.b16 %v1953
  %v1963 = vunpack.c.l.b16 %v1954
  %v1964 = vpack.c.b16 %v1963, %v1962
  %vm1966 = vcmask 130048
  %v1968 = vsel %vm1966, %v1945, 0
  %v1971 = vsel %vm1966, %v1946, 0
  %v1974 = vsel %vm1966, %v1947, 0
  %v1977 = vsel %vm1966, %v1948, 0
  %v1980 = vsel %vm1966, %v1949, 0
  %v1983 = vsel %vm1966, %v1950, 0
  %v1986 = vsel %vm1966, %v1951, 0
  %v1989 = vsel %vm1966, %v1952, 0
  %1991 = vmatprep.subr.bf16.mxu0 0
  %1992 = vmatpush1.bf16.msra.mxu0 0
  %1993 = vmatprep.subr.bf16.mxu0 0
  %1994 = vmatpush1.bf16.msra.mxu0 0
  %1995 = vmatprep.subr.bf16.mxu0 0
  %1996 = vmatpush1.bf16.msra.mxu0 0
  %1997 = vmatprep.subr.bf16.mxu0 0
  %1998 = vmatpush1.bf16.msra.mxu0 0
  %1999 = vmatprep.subr.bf16.mxu0 0
  %2000 = vmatpush1.bf16.msra.mxu0 0
  %2001 = vmatprep.subr.bf16.mxu0 0
  %2002 = vmatpush1.bf16.msra.mxu0 0
  %2003 = vmatprep.subr.bf16.mxu0 0
  %2004 = vmatpush1.bf16.msra.mxu0 0
  %2005 = vmatprep.subr.bf16.mxu0 0
  %2006 = vmatpush1.bf16.msra.mxu0 %v1964
  %2007 = vmatprep.subr.bf16.mxu0 0
  %2008 = vmatpush2.bf16.msra.mxu0 0
  %2009 = vmatprep.subr.bf16.mxu0 0
  %2010 = vmatpush2.bf16.msra.mxu0 0
  %2011 = vmatprep.subr.bf16.mxu0 0
  %2012 = vmatpush2.bf16.msra.mxu0 0
  %2013 = vmatprep.subr.bf16.mxu0 0
  %2014 = vmatpush2.bf16.msra.mxu0 0
  %2015 = vmatprep.subr.bf16.mxu0 0
  %2016 = vmatpush2.bf16.msra.mxu0 0
  %2017 = vmatprep.subr.bf16.mxu0 0
  %2018 = vmatpush2.bf16.msra.mxu0 0
  %2019 = vmatprep.subr.bf16.mxu0 0
  %2020 = vmatpush2.bf16.msra.mxu0 0
  %2021 = vmatprep.subr.bf16.mxu0 0
  %2022 = vmatpush2.bf16.msra.mxu0 0
  %2023 = vmatprep.mubr.bf16.mxu0 0
  %2024 = vmatmul.mubr.bf16.gmra.mxu0 %v1968
  %v2025 = vpop.f32.mrf.mxu0
  %v2026 = vadd.f32 %v1959, %v2025
  %v2027 = vpop.f32.mrf.mxu0
  %v2028 = vpop.f32.mrf.mxu0
  %v2029 = vadd.f32 %v1959, %v2028
  %v2030 = vpop.f32.mrf.mxu0
  %2031 = vmatprep.mubr.bf16.mxu0 0
  %2032 = vmatmul.mubr.bf16.gmra.mxu0 %v1971
  %v2033 = vpop.f32.mrf.mxu0
  %v2034 = vadd.f32 %v1959, %v2033
  %v2035 = vpop.f32.mrf.mxu0
  %v2036 = vpop.f32.mrf.mxu0
  %v2037 = vadd.f32 %v1959, %v2036
  %v2038 = vpop.f32.mrf.mxu0
  %2039 = vmatprep.mubr.bf16.mxu0 0
  %2040 = vmatmul.mubr.bf16.gmra.mxu0 %v1974
  %v2041 = vpop.f32.mrf.mxu0
  %v2042 = vadd.f32 %v1959, %v2041
  %v2043 = vpop.f32.mrf.mxu0
  %v2044 = vpop.f32.mrf.mxu0
  %v2045 = vadd.f32 %v1959, %v2044
  %v2046 = vpop.f32.mrf.mxu0
  %2047 = vmatprep.mubr.bf16.mxu0 0
  %2048 = vmatmul.mubr.bf16.gmra.mxu0 %v1977
  %v2049 = vpop.f32.mrf.mxu0
  %v2050 = vadd.f32 %v1959, %v2049
  %v2051 = vpop.f32.mrf.mxu0
  %v2052 = vpop.f32.mrf.mxu0
  %v2053 = vadd.f32 %v1959, %v2052
  %v2054 = vpop.f32.mrf.mxu0
  %2055 = vmatprep.mubr.bf16.mxu0 0
  %2056 = vmatmul.mubr.bf16.gmra.mxu0 %v1980
  %v2057 = vpop.f32.mrf.mxu0
  %v2058 = vadd.f32 %v1959, %v2057
  %v2059 = vpop.f32.mrf.mxu0
  %v2060 = vpop.f32.mrf.mxu0
  %v2061 = vadd.f32 %v1959, %v2060
  %v2062 = vpop.f32.mrf.mxu0
  %2063 = vmatprep.mubr.bf16.mxu0 0
  %2064 = vmatmul.mubr.bf16.gmra.mxu0 %v1983
  %v2065 = vpop.f32.mrf.mxu0
  %v2066 = vadd.f32 %v1959, %v2065
  %v2067 = vpop.f32.mrf.mxu0
  %v2068 = vpop.f32.mrf.mxu0
  %v2069 = vadd.f32 %v1959, %v2068
  %v2070 = vpop.f32.mrf.mxu0
  %2071 = vmatprep.mubr.bf16.mxu0 0
  %2072 = vmatmul.mubr.bf16.gmra.mxu0 %v1986
  %v2073 = vpop.f32.mrf.mxu0
  %v2074 = vadd.f32 %v1959, %v2073
  %v2075 = vpop.f32.mrf.mxu0
  %v2076 = vpop.f32.mrf.mxu0
  %v2077 = vadd.f32 %v1959, %v2076
  %v2078 = vpop.f32.mrf.mxu0
  %2079 = vmatprep.mubr.bf16.mxu0 0
  %2080 = vmatmul.mubr.bf16.gmra.mxu0 %v1989
  %v2081 = vpop.f32.mrf.mxu0
  %v2082 = vadd.f32 %v1959, %v2081
  %v2083 = vpop.f32.mrf.mxu0
  %v2084 = vpop.f32.mrf.mxu0
  %v2085 = vadd.f32 %v1959, %v2084
  %v2086 = vpop.f32.mrf.mxu0
  %2087 = vdwg.mxu0
  %v2088 = vsub.f32 0.0, %v2026
  %v2089 = vsub.f32 0.0, %v2029
  %v2090 = vsub.f32 0.0, %v2034
  %v2091 = vsub.f32 0.0, %v2037
  %v2092 = vsub.f32 0.0, %v2042
  %v2093 = vsub.f32 0.0, %v2045
  %v2094 = vsub.f32 0.0, %v2050
  %v2095 = vsub.f32 0.0, %v2053
  %v2096 = vsub.f32 0.0, %v2058
  %v2097 = vsub.f32 0.0, %v2061
  %v2098 = vsub.f32 0.0, %v2066
  %v2099 = vsub.f32 0.0, %v2069
  %v2100 = vsub.f32 0.0, %v2074
  %v2101 = vsub.f32 0.0, %v2077
  %v2102 = vsub.f32 0.0, %v2082
  %v2103 = vsub.f32 0.0, %v2085
  %v2104 = vmul.f32 %v2088, 1.442695
  %v2105 = vpow.pop %v2104
  %v2106 = vmul.f32 %v2089, 1.442695
  %v2107 = vpow.pop %v2106
  %v2108 = vmul.f32 %v2090, 1.442695
  %v2109 = vpow.pop %v2108
  %v2110 = vmul.f32 %v2091, 1.442695
  %v2111 = vpow.pop %v2110
  %v2112 = vmul.f32 %v2092, 1.442695
  %v2113 = vpow.pop %v2112
  %v2114 = vmul.f32 %v2093, 1.442695
  %v2115 = vpow.pop %v2114
  %v2116 = vmul.f32 %v2094, 1.442695
  %v2117 = vpow.pop %v2116
  %v2118 = vmul.f32 %v2095, 1.442695
  %v2119 = vpow.pop %v2118
  %v2120 = vmul.f32 %v2096, 1.442695
  %v2121 = vpow.pop %v2120
  %v2122 = vmul.f32 %v2097, 1.442695
  %v2123 = vpow.pop %v2122
  %v2124 = vmul.f32 %v2098, 1.442695
  %v2125 = vpow.pop %v2124
  %v2126 = vmul.f32 %v2099, 1.442695
  %v2127 = vpow.pop %v2126
  %v2128 = vmul.f32 %v2100, 1.442695
  %v2129 = vpow.pop %v2128
  %v2130 = vmul.f32 %v2101, 1.442695
  %v2131 = vpow.pop %v2130
  %v2132 = vmul.f32 %v2102, 1.442695
  %v2133 = vpow.pop %v2132
  %v2134 = vmul.f32 %v2103, 1.442695
  %v2135 = vpow.pop %v2134
  %v2136 = vadd.f32 %v2105, 1.0
  %v2137 = vadd.f32 %v2107, 1.0
  %v2138 = vadd.f32 %v2109, 1.0
  %v2139 = vadd.f32 %v2111, 1.0
  %v2140 = vadd.f32 %v2113, 1.0
  %v2141 = vadd.f32 %v2115, 1.0
  %v2142 = vadd.f32 %v2117, 1.0
  %v2143 = vadd.f32 %v2119, 1.0
  %v2144 = vadd.f32 %v2121, 1.0
  %v2145 = vadd.f32 %v2123, 1.0
  %v2146 = vadd.f32 %v2125, 1.0
  %v2147 = vadd.f32 %v2127, 1.0
  %v2148 = vadd.f32 %v2129, 1.0
  %v2149 = vadd.f32 %v2131, 1.0
  %v2150 = vadd.f32 %v2133, 1.0
  %v2151 = vadd.f32 %v2135, 1.0
  %v2152 = vrcp.pop %v2136
  %v2153 = vrcp.pop %v2137
  %v2154 = vrcp.pop %v2138
  %v2155 = vrcp.pop %v2139
  %v2156 = vrcp.pop %v2140
  %v2157 = vrcp.pop %v2141
  %v2158 = vrcp.pop %v2142
  %v2159 = vrcp.pop %v2143
  %v2160 = vrcp.pop %v2144
  %v2161 = vrcp.pop %v2145
  %v2162 = vrcp.pop %v2146
  %v2163 = vrcp.pop %v2147
  %v2164 = vrcp.pop %v2148
  %v2165 = vrcp.pop %v2149
  %v2166 = vrcp.pop %v2150
  %v2167 = vrcp.pop %v2151
  %vm2168 = vcmask 23552
  %2169 = vst.msk [vmem:[%s4] sm:$0xff] %vm2168, %v2152
  %2170 = vst.msk [vmem:[%s4 + $0x8] sm:$0xff] %vm2168, %v2153
  %2171 = vst.msk [vmem:[%s4 + $0x10] sm:$0xff] %vm2168, %v2154
  %2172 = vst.msk [vmem:[%s4 + $0x18] sm:$0xff] %vm2168, %v2155
  %2173 = vst.msk [vmem:[%s4 + $0x20] sm:$0xff] %vm2168, %v2156
  %2174 = vst.msk [vmem:[%s4 + $0x28] sm:$0xff] %vm2168, %v2157
  %2175 = vst.msk [vmem:[%s4 + $0x30] sm:$0xff] %vm2168, %v2158
  %2176 = vst.msk [vmem:[%s4 + $0x38] sm:$0xff] %vm2168, %v2159
  %2177 = vst.msk [vmem:[%s4 + $0x40] sm:$0xff] %vm2168, %v2160
  %2178 = vst.msk [vmem:[%s4 + $0x48] sm:$0xff] %vm2168, %v2161
  %2179 = vst.msk [vmem:[%s4 + $0x50] sm:$0xff] %vm2168, %v2162
  %2180 = vst.msk [vmem:[%s4 + $0x58] sm:$0xff] %vm2168, %v2163
  %2181 = vst.msk [vmem:[%s4 + $0x60] sm:$0xff] %vm2168, %v2164
  %2182 = vst.msk [vmem:[%s4 + $0x68] sm:$0xff] %vm2168, %v2165
  %2183 = vst.msk [vmem:[%s4 + $0x70] sm:$0xff] %vm2168, %v2166
  %2184 = vst.msk [vmem:[%s4 + $0x78] sm:$0xff] %vm2168, %v2167
  // Predicated region
  $region18: #{vanilla_nerf_forward.1} parent=0 // pred_check
    _
  $region19: #{vanilla_nerf_forward.1} parent=0 // pred_check_branch
    %2186 = sbr.rel (0) target = $region21
  $region20: #{vanilla_nerf_forward.1} parent=0 // pred_region
    _
  $region21: #{vanilla_nerf_forward.1} parent=0 // pred_fallthru
    _
  // Predicated region
  $region22: #{vanilla_nerf_forward.1} parent=0 // pred_check
    _
  $region23: #{vanilla_nerf_forward.1} parent=0 // pred_check_branch
    %2188 = sbr.rel (0) target = $region25
  $region24: #{vanilla_nerf_forward.1} parent=0 // pred_region
    _
  $region25: #{vanilla_nerf_forward.1} parent=0 // pred_fallthru
    _

</llo_original>
